<compile_context>
chip_gen: v7x
topology: tpu7x:2x2x1
jax: 0.10.0
libtpu: 0.0.40
codegen_flags: <defaults>
</compile_context>

<pallas_src>
import functools

import jax
import jax.numpy as jnp
from jax import lax
from jax.experimental import pallas as pl
from jax.experimental.pallas import tpu as pltpu


# --------------------------------------------------------------------------- #
# Hardware-aware helpers
# --------------------------------------------------------------------------- #
def _vmem_limit_bytes():
    """~60% of per-core VMEM, capped at 64 MiB (v7x has 64 MiB/TC, v5e/v6e 128)."""
    try:
        cap = int(pltpu.get_tpu_info().vmem_capacity_bytes)
    except Exception:
        cap = 128 * 1024 * 1024
    return min(64 * 1024 * 1024, int(cap * 0.6))


def _has_bf16_vpu():
    """Best-effort: v6e / v7x have a bf16-native VPU; v5e and older do not."""
    try:
        info = pltpu.get_tpu_info()
        name = ""
        for attr in ("chip_version", "chip", "version", "name"):
            v = getattr(info, attr, None)
            if v is not None:
                name += str(v).lower() + " "
        if not name.strip():
            return False
        return not any(t in name for t in ("v2", "v3", "v4", "v5"))
    except Exception:
        return False


def _pick_tile_h(H, W, target_rows=1024):
    """Divisor of H giving <= target_rows output rows per step, preferring
    TH*W aligned to the 256-row MXU tile (128 as fallback), then minimal pad."""
    cands = [th for th in range(1, H + 1) if H % th == 0 and th * W <= target_rows]
    if not cands:
        return 1

    def score(th):
        rows = th * W
        waste256 = (-rows) % 256
        waste128 = (-rows) % 128
        return (waste256 == 0, waste128 == 0, -waste256 / (rows + waste256), rows)

    return max(cands, key=score)


# --------------------------------------------------------------------------- #
# Kernel
# --------------------------------------------------------------------------- #
def _block_kernel(xpad_ref, dww_ref, dwb_ref, w1_ref, b1_ref, w2_ref, b2_ref,
                  out_ref, *, W, C, TH, eps, dw_dtype, approx_gelu):
    # Which horizontal strip of the image this grid step produces.
    h0 = pl.multiple_of(pl.program_id(1) * TH, TH)

    # --- depthwise 7x7 conv (spatial padding applied outside) ---
    # 7 W-shifted slabs, each read straight from the pipelined VMEM block
    # (one unaligned-sublane window per kw, no full-slab value + copies).
    # The kh shifts slice only the untiled leading axis (vreg selection, free).
    dwf = dww_ref[...].astype(dw_dtype)                                 # (7 kw, 7 kh, C)
    taps = [[dwf[kw, kh].reshape(1, 1, C) for kh in range(7)] for kw in range(7)]

    acc_a = None   # two running accumulators: enough ILP, minimal spill
    acc_b = None
    for kw in range(7):
        xw = xpad_ref[0, pl.ds(h0, TH + 6), kw:kw + W, :].astype(dw_dtype)  # (TH+6, W, C)
        for kh in range(7):
            t = xw[kh:kh + TH] * taps[kw][kh]
            if kh % 2 == 0:
                acc_a = t if acc_a is None else acc_a + t
            else:
                acc_b = t if acc_b is None else acc_b + t
    acc = acc_a.astype(jnp.float32) + acc_b.astype(jnp.float32)
    acc = acc + dwb_ref[...].astype(jnp.float32).reshape(1, 1, C)           # (TH, W, C)

    # --- LayerNorm over channels (biased variance, channels_last) ---
    # The affine (ln_w, ln_b) is folded into w1/b1 in the wrapper, so only the
    # normalization remains here.
    u = jnp.mean(acc, axis=-1, keepdims=True)
    d = acc - u
    var = jnp.mean(d * d, axis=-1, keepdims=True)
    xn = d * lax.rsqrt(var + eps)

    # --- pointwise MLP on the MXU: Linear(C,4C) -> GELU -> Linear(4C,C) ---
    # bf16 operands, f32 accumulation; ln/gamma already folded into the weights.
    # TODO(synk): when W % 8 != 0 the (TH,W,C)->(TH*W,C) merge may relayout; a
    # dedicated (TH*W, C) VMEM scratch would remove that copy.
    xf = xn.reshape(TH * W, C).astype(w1_ref.dtype)
    h1 = jnp.dot(xf, w1_ref[...], preferred_element_type=jnp.float32)
    h1 = h1 + b1_ref[...].astype(jnp.float32)
    if approx_gelu:
        h1 = jax.nn.gelu(h1, approximate=True)            # tanh path -> EUP slot
    else:
        h1 = 0.5 * h1 * (1.0 + lax.erf(h1 * 0.7071067811865476))  # exact nn.GELU()
    y = jnp.dot(h1.astype(w2_ref.dtype), w2_ref[...], preferred_element_type=jnp.float32)
    y = (y + b2_ref[...].astype(jnp.float32)).reshape(TH, W, C)

    # --- residual add ---
    # Residual read late (short live range) straight from the padded tile
    # interior, in the input dtype so it stays exact even if the depthwise math
    # ran in bf16.
    res = xpad_ref[0, pl.ds(h0 + 3, TH), 3:3 + W, :].astype(jnp.float32)
    out_ref[0] = (res + y).astype(out_ref.dtype)


# --------------------------------------------------------------------------- #
# Wrappers
# --------------------------------------------------------------------------- #
def _fold_params(params, mm_dtype):
    """Fold LayerNorm affine into pwconv1 and gamma into pwconv2 (in f32)."""
    lnw = params["ln_w"].astype(jnp.float32)
    lnb = params["ln_b"].astype(jnp.float32)
    gamma = params["gamma"].astype(jnp.float32)
    w1 = params["pw1_w"].astype(jnp.float32).T          # (C, 4C)
    b1 = params["pw1_b"].astype(jnp.float32)            # (4C,)
    w2 = params["pw2_w"].astype(jnp.float32).T          # (4C, C)
    b2 = params["pw2_b"].astype(jnp.float32)            # (C,)

    w1f = (lnw[:, None] * w1).astype(mm_dtype)          # diag(ln_w) @ w1
    b1f = (b1 + lnb @ w1).reshape(1, -1)                # b1 + ln_b @ w1
    w2f = (w2 * gamma[None, :]).astype(mm_dtype)        # w2 * gamma
    b2f = (b2 * gamma).reshape(1, -1)                   # b2 * gamma

    dww = jnp.transpose(params["dwconv_w"][:, 0], (2, 1, 0))   # (kw, kh, C)
    dwb = params["dwconv_b"].reshape(1, -1)
    return dww, dwb, w1f, b1f, w2f, b2f


def convnext_block_nhwc(x_nhwc, params, *, eps=1e-6, use_bf16_matmul=True,
                        tile_h=None, dw_bf16=None, approx_gelu=False):
    """NHWC entry point (use this when chaining blocks to skip the transposes)."""
    B, H, W, C = x_nhwc.shape
    C4 = 4 * C
    Hp, Wp = H + 6, W + 6

    TH = tile_h if (tile_h is not None and H % tile_h == 0) else _pick_tile_h(H, W)
    NH = H // TH

    if dw_bf16 is None:
        dw_bf16 = _has_bf16_vpu()
    dw_dtype = jnp.bfloat16 if dw_bf16 else jnp.float32
    mm_dtype = jnp.bfloat16 if use_bf16_matmul else x_nhwc.dtype

    # Spatial pad for the 7x7 / pad=3 depthwise conv.
    x_pad = jnp.pad(x_nhwc, ((0, 0), (3, 3), (3, 3), (0, 0)))    # (B, H+6, W+6, C)

    dww, dwb, w1f, b1f, w2f, b2f = _fold_params(params, mm_dtype)

    kernel = functools.partial(_block_kernel, W=W, C=C, TH=TH, eps=eps,
                               dw_dtype=dw_dtype, approx_gelu=approx_gelu)

    out_nhwc = pl.pallas_call(
        kernel,
        out_shape=jax.ShapeDtypeStruct((B, H, W, C), x_nhwc.dtype),
        grid_spec=pltpu.PrefetchScalarGridSpec(
            num_scalar_prefetch=0,
            grid=(B, NH),
            in_specs=[
                # Padded image: block index constant in h -> DMA'd once per batch,
                # revisited across the H tiles.
                pl.BlockSpec((1, Hp, Wp, C), lambda b, h: (b, 0, 0, 0)),
                pl.BlockSpec((7, 7, C), lambda b, h: (0, 0, 0)),   # dw weight (kw,kh,C)
                pl.BlockSpec((1, C), lambda b, h: (0, 0)),         # dw bias
                pl.BlockSpec((C, C4), lambda b, h: (0, 0)),        # folded pwconv1 W
                pl.BlockSpec((1, C4), lambda b, h: (0, 0)),        # folded pwconv1 b
                pl.BlockSpec((C4, C), lambda b, h: (0, 0)),        # folded pwconv2 W
                pl.BlockSpec((1, C), lambda b, h: (0, 0)),         # folded pwconv2 b
            ],
            out_specs=pl.BlockSpec((1, TH, W, C), lambda b, h: (b, h, 0, 0)),
        ),
        compiler_params=pltpu.CompilerParams(
            dimension_semantics=("parallel", "parallel"),
            vmem_limit_bytes=_vmem_limit_bytes(),
        ),
    )(x_pad, dww, dwb, w1f, b1f, w2f, b2f)

    return out_nhwc


def convnext_block(x_nchw, params, *, eps=1e-6, use_bf16_matmul=True,
                   tile_h=None, dw_bf16=None, approx_gelu=False):
    """NCHW wrapper matching Block.forward (drop_path=0.0 => Identity)."""
    x_nhwc = jnp.transpose(x_nchw, (0, 2, 3, 1))
    out_nhwc = convnext_block_nhwc(x_nhwc, params, eps=eps,
                                   use_bf16_matmul=use_bf16_matmul,
                                   tile_h=tile_h, dw_bf16=dw_bf16,
                                   approx_gelu=approx_gelu)
    return jnp.transpose(out_nhwc, (0, 3, 1, 2))


# --------------------------------------------------------------------------- #
# Pure-JAX reference & test harness
# --------------------------------------------------------------------------- #
def _reference(x_nchw, params, *, eps=1e-6):
    """Pure-JAX f32 reference of Block.forward (for correctness check)."""
    B, C, H, W = x_nchw.shape
    dn = lax.conv_dimension_numbers(x_nchw.shape, params["dwconv_w"].shape,
                                    ("NCHW", "OIHW", "NCHW"))
    y = lax.conv_general_dilated(x_nchw, params["dwconv_w"], (1, 1),
                                 ((3, 3), (3, 3)), dimension_numbers=dn,
                                 feature_group_count=C)
    y = y + params["dwconv_b"][None, :, None, None]
    y = jnp.transpose(y, (0, 2, 3, 1))
    u = y.mean(-1, keepdims=True)
    v = ((y - u) ** 2).mean(-1, keepdims=True)
    y = (y - u) / jnp.sqrt(v + eps) * params["ln_w"] + params["ln_b"]
    y = y @ params["pw1_w"].T + params["pw1_b"]
    y = 0.5 * y * (1.0 + lax.erf(y / jnp.sqrt(2.0)))
    y = y @ params["pw2_w"].T + params["pw2_b"]
    y = params["gamma"] * y
    y = jnp.transpose(y, (0, 3, 1, 2))
    return x_nchw + y


def _init_params(key, dim, layer_scale_init_value=1e-6):
    ks = jax.random.split(key, 6)
    return {
        "dwconv_w": 0.02 * jax.random.normal(ks[0], (dim, 1, 7, 7), jnp.float32),
        "dwconv_b": 0.01 * jax.random.normal(ks[1], (dim,), jnp.float32),
        "ln_w": jnp.ones((dim,), jnp.float32),
        "ln_b": jnp.zeros((dim,), jnp.float32),
        "pw1_w": 0.02 * jax.random.normal(ks[2], (4 * dim, dim), jnp.float32),
        "pw1_b": 0.01 * jax.random.normal(ks[3], (4 * dim,), jnp.float32),
        "pw2_w": 0.02 * jax.random.normal(ks[4], (dim, 4 * dim), jnp.float32),
        "pw2_b": 0.01 * jax.random.normal(ks[5], (dim,), jnp.float32),
        "gamma": layer_scale_init_value * jnp.ones((dim,), jnp.float32),
    }


if __name__ == "__main__":
    B, C, H, W = 2, 16, 8, 8
    key = jax.random.PRNGKey(0)
    kx, kp = jax.random.split(key)
    x = jax.random.normal(kx, (B, C, H, W), jnp.float32)
    # layer_scale_init_value=1.0 (module default is 1e-6) so the MLP path actually
    # contributes and the correctness check is meaningful; tolerance is relaxed
    # because the matmuls deliberately run bf16-in / f32-accumulate.
    params = _init_params(kp, C, layer_scale_init_value=1.0)

    ref = jax.block_until_ready(_reference(x, params))

    # Default config (single H tile per batch on these shapes; depthwise dtype
    # auto-selected from the chip generation).
    out = jax.block_until_ready(convnext_block(x, params))
    assert out.shape == (B, C, H, W)
    err = float(jnp.max(jnp.abs(out - ref)))
    assert jnp.allclose(out, ref, atol=2e-2, rtol=2e-2), f"max abs diff {err}"

    # Multiple H tiles (grid = (B, 2)) with f32 depthwise, exercising the
    # spatial-tiling path.
    out2 = jax.block_until_ready(convnext_block(x, params, tile_h=4, dw_bf16=False))
    err2 = float(jnp.max(jnp.abs(out2 - ref)))
    assert jnp.allclose(out2, ref, atol=2e-2, rtol=2e-2), f"max abs diff {err2}"

    # Explicit bf16 depthwise path (the v6e/v7x fast path).
    out3 = jax.block_until_ready(convnext_block(x, params, dw_bf16=True))
    err3 = float(jnp.max(jnp.abs(out3 - ref)))
    assert jnp.allclose(out3, ref, atol=3e-2, rtol=3e-2), f"max abs diff {err3}"

    # drop_path=0.0 in Block.__init__ => Identity; nothing to implement for it.
    print("KERNEL_OK")
</pallas_src>

<mosaic_0001>
module attributes {stable_mosaic.version = 11 : i64} {
  func.func @_block_kernel(%arg0: i32, %arg1: i32, %arg2: memref<1x14x14x16xf32, #tpu.memory_space<vmem>>, %arg3: memref<7x7x16xf32, #tpu.memory_space<vmem>>, %arg4: memref<1x16xf32, #tpu.memory_space<vmem>>, %arg5: memref<16x64xbf16, #tpu.memory_space<vmem>>, %arg6: memref<1x64xf32, #tpu.memory_space<vmem>>, %arg7: memref<64x16xbf16, #tpu.memory_space<vmem>>, %arg8: memref<1x16xf32, #tpu.memory_space<vmem>>, %arg9: memref<1x8x8x16xf32, #tpu.memory_space<vmem>>) attributes {dimension_semantics = [#tpu.dimension_semantics<parallel>, #tpu.dimension_semantics<parallel>], iteration_bounds = array<i64: 2, 1>, scalar_prefetch = 0 : i64, scratch_operands = 0 : i64, tpu.core_type = #tpu.core_type<tc>, window_params = [{transform_indices = @transform_0, window_bounds = array<i64: 1, 14, 14, 16>}, {pipeline_mode = #tpu.pipeline_mode<synchronous>, transform_indices = @transform_1, window_bounds = array<i64: 7, 7, 16>}, {pipeline_mode = #tpu.pipeline_mode<synchronous>, transform_indices = @transform_2, window_bounds = array<i64: 1, 16>}, {pipeline_mode = #tpu.pipeline_mode<synchronous>, transform_indices = @transform_3, window_bounds = array<i64: 16, 64>}, {pipeline_mode = #tpu.pipeline_mode<synchronous>, transform_indices = @transform_4, window_bounds = array<i64: 1, 64>}, {pipeline_mode = #tpu.pipeline_mode<synchronous>, transform_indices = @transform_5, window_bounds = array<i64: 64, 16>}, {pipeline_mode = #tpu.pipeline_mode<synchronous>, transform_indices = @transform_6, window_bounds = array<i64: 1, 16>}, {transform_indices = @transform_7, window_bounds = array<i64: 1, 8, 8, 16>}]} {
    %c8_i32 = arith.constant 8 : i32
    %0 = arith.muli %arg1, %c8_i32 : i32
    %1 = tpu.assume_multiple %0, 8 : i32
    %c0 = arith.constant 0 : index
    %c0_0 = arith.constant 0 : index
    %c0_1 = arith.constant 0 : index
    %2 = vector.load %arg3[%c0, %c0_0, %c0_1] : memref<7x7x16xf32, #tpu.memory_space<vmem>>, vector<7x7x16xf32>
    %3 = vector.extract_strided_slice %2 {offsets = [0, 0, 0], sizes = [1, 1, 16], strides = [1, 1, 1]} : vector<7x7x16xf32> to vector<1x1x16xf32>
    %4 = vector.shape_cast %3 : vector<1x1x16xf32> to vector<16xf32>
    %5 = vector.shape_cast %4 : vector<16xf32> to vector<1x1x16xf32>
    %6 = vector.extract_strided_slice %2 {offsets = [0, 1, 0], sizes = [1, 1, 16], strides = [1, 1, 1]} : vector<7x7x16xf32> to vector<1x1x16xf32>
    %7 = vector.shape_cast %6 : vector<1x1x16xf32> to vector<16xf32>
    %8 = vector.shape_cast %7 : vector<16xf32> to vector<1x1x16xf32>
    %9 = vector.extract_strided_slice %2 {offsets = [0, 2, 0], sizes = [1, 1, 16], strides = [1, 1, 1]} : vector<7x7x16xf32> to vector<1x1x16xf32>
    %10 = vector.shape_cast %9 : vector<1x1x16xf32> to vector<16xf32>
    %11 = vector.shape_cast %10 : vector<16xf32> to vector<1x1x16xf32>
    %12 = vector.extract_strided_slice %2 {offsets = [0, 3, 0], sizes = [1, 1, 16], strides = [1, 1, 1]} : vector<7x7x16xf32> to vector<1x1x16xf32>
    %13 = vector.shape_cast %12 : vector<1x1x16xf32> to vector<16xf32>
    %14 = vector.shape_cast %13 : vector<16xf32> to vector<1x1x16xf32>
    %15 = vector.extract_strided_slice %2 {offsets = [0, 4, 0], sizes = [1, 1, 16], strides = [1, 1, 1]} : vector<7x7x16xf32> to vector<1x1x16xf32>
    %16 = vector.shape_cast %15 : vector<1x1x16xf32> to vector<16xf32>
    %17 = vector.shape_cast %16 : vector<16xf32> to vector<1x1x16xf32>
    %18 = vector.extract_strided_slice %2 {offsets = [0, 5, 0], sizes = [1, 1, 16], strides = [1, 1, 1]} : vector<7x7x16xf32> to vector<1x1x16xf32>
    %19 = vector.shape_cast %18 : vector<1x1x16xf32> to vector<16xf32>
    %20 = vector.shape_cast %19 : vector<16xf32> to vector<1x1x16xf32>
    %21 = vector.extract_strided_slice %2 {offsets = [0, 6, 0], sizes = [1, 1, 16], strides = [1, 1, 1]} : vector<7x7x16xf32> to vector<1x1x16xf32>
    %22 = vector.shape_cast %21 : vector<1x1x16xf32> to vector<16xf32>
    %23 = vector.shape_cast %22 : vector<16xf32> to vector<1x1x16xf32>
    %24 = vector.extract_strided_slice %2 {offsets = [1, 0, 0], sizes = [1, 1, 16], strides = [1, 1, 1]} : vector<7x7x16xf32> to vector<1x1x16xf32>
    %25 = vector.shape_cast %24 : vector<1x1x16xf32> to vector<16xf32>
    %26 = vector.shape_cast %25 : vector<16xf32> to vector<1x1x16xf32>
    %27 = vector.extract_strided_slice %2 {offsets = [1, 1, 0], sizes = [1, 1, 16], strides = [1, 1, 1]} : vector<7x7x16xf32> to vector<1x1x16xf32>
    %28 = vector.shape_cast %27 : vector<1x1x16xf32> to vector<16xf32>
    %29 = vector.shape_cast %28 : vector<16xf32> to vector<1x1x16xf32>
    %30 = vector.extract_strided_slice %2 {offsets = [1, 2, 0], sizes = [1, 1, 16], strides = [1, 1, 1]} : vector<7x7x16xf32> to vector<1x1x16xf32>
    %31 = vector.shape_cast %30 : vector<1x1x16xf32> to vector<16xf32>
    %32 = vector.shape_cast %31 : vector<16xf32> to vector<1x1x16xf32>
    %33 = vector.extract_strided_slice %2 {offsets = [1, 3, 0], sizes = [1, 1, 16], strides = [1, 1, 1]} : vector<7x7x16xf32> to vector<1x1x16xf32>
    %34 = vector.shape_cast %33 : vector<1x1x16xf32> to vector<16xf32>
    %35 = vector.shape_cast %34 : vector<16xf32> to vector<1x1x16xf32>
    %36 = vector.extract_strided_slice %2 {offsets = [1, 4, 0], sizes = [1, 1, 16], strides = [1, 1, 1]} : vector<7x7x16xf32> to vector<1x1x16xf32>
    %37 = vector.shape_cast %36 : vector<1x1x16xf32> to vector<16xf32>
    %38 = vector.shape_cast %37 : vector<16xf32> to vector<1x1x16xf32>
    %39 = vector.extract_strided_slice %2 {offsets = [1, 5, 0], sizes = [1, 1, 16], strides = [1, 1, 1]} : vector<7x7x16xf32> to vector<1x1x16xf32>
    %40 = vector.shape_cast %39 : vector<1x1x16xf32> to vector<16xf32>
    %41 = vector.shape_cast %40 : vector<16xf32> to vector<1x1x16xf32>
    %42 = vector.extract_strided_slice %2 {offsets = [1, 6, 0], sizes = [1, 1, 16], strides = [1, 1, 1]} : vector<7x7x16xf32> to vector<1x1x16xf32>
    %43 = vector.shape_cast %42 : vector<1x1x16xf32> to vector<16xf32>
    %44 = vector.shape_cast %43 : vector<16xf32> to vector<1x1x16xf32>
    %45 = vector.extract_strided_slice %2 {offsets = [2, 0, 0], sizes = [1, 1, 16], strides = [1, 1, 1]} : vector<7x7x16xf32> to vector<1x1x16xf32>
    %46 = vector.shape_cast %45 : vector<1x1x16xf32> to vector<16xf32>
    %47 = vector.shape_cast %46 : vector<16xf32> to vector<1x1x16xf32>
    %48 = vector.extract_strided_slice %2 {offsets = [2, 1, 0], sizes = [1, 1, 16], strides = [1, 1, 1]} : vector<7x7x16xf32> to vector<1x1x16xf32>
    %49 = vector.shape_cast %48 : vector<1x1x16xf32> to vector<16xf32>
    %50 = vector.shape_cast %49 : vector<16xf32> to vector<1x1x16xf32>
    %51 = vector.extract_strided_slice %2 {offsets = [2, 2, 0], sizes = [1, 1, 16], strides = [1, 1, 1]} : vector<7x7x16xf32> to vector<1x1x16xf32>
    %52 = vector.shape_cast %51 : vector<1x1x16xf32> to vector<16xf32>
    %53 = vector.shape_cast %52 : vector<16xf32> to vector<1x1x16xf32>
    %54 = vector.extract_strided_slice %2 {offsets = [2, 3, 0], sizes = [1, 1, 16], strides = [1, 1, 1]} : vector<7x7x16xf32> to vector<1x1x16xf32>
    %55 = vector.shape_cast %54 : vector<1x1x16xf32> to vector<16xf32>
    %56 = vector.shape_cast %55 : vector<16xf32> to vector<1x1x16xf32>
    %57 = vector.extract_strided_slice %2 {offsets = [2, 4, 0], sizes = [1, 1, 16], strides = [1, 1, 1]} : vector<7x7x16xf32> to vector<1x1x16xf32>
    %58 = vector.shape_cast %57 : vector<1x1x16xf32> to vector<16xf32>
    %59 = vector.shape_cast %58 : vector<16xf32> to vector<1x1x16xf32>
    %60 = vector.extract_strided_slice %2 {offsets = [2, 5, 0], sizes = [1, 1, 16], strides = [1, 1, 1]} : vector<7x7x16xf32> to vector<1x1x16xf32>
    %61 = vector.shape_cast %60 : vector<1x1x16xf32> to vector<16xf32>
    %62 = vector.shape_cast %61 : vector<16xf32> to vector<1x1x16xf32>
    %63 = vector.extract_strided_slice %2 {offsets = [2, 6, 0], sizes = [1, 1, 16], strides = [1, 1, 1]} : vector<7x7x16xf32> to vector<1x1x16xf32>
    %64 = vector.shape_cast %63 : vector<1x1x16xf32> to vector<16xf32>
    %65 = vector.shape_cast %64 : vector<16xf32> to vector<1x1x16xf32>
    %66 = vector.extract_strided_slice %2 {offsets = [3, 0, 0], sizes = [1, 1, 16], strides = [1, 1, 1]} : vector<7x7x16xf32> to vector<1x1x16xf32>
    %67 = vector.shape_cast %66 : vector<1x1x16xf32> to vector<16xf32>
    %68 = vector.shape_cast %67 : vector<16xf32> to vector<1x1x16xf32>
    %69 = vector.extract_strided_slice %2 {offsets = [3, 1, 0], sizes = [1, 1, 16], strides = [1, 1, 1]} : vector<7x7x16xf32> to vector<1x1x16xf32>
    %70 = vector.shape_cast %69 : vector<1x1x16xf32> to vector<16xf32>
    %71 = vector.shape_cast %70 : vector<16xf32> to vector<1x1x16xf32>
    %72 = vector.extract_strided_slice %2 {offsets = [3, 2, 0], sizes = [1, 1, 16], strides = [1, 1, 1]} : vector<7x7x16xf32> to vector<1x1x16xf32>
    %73 = vector.shape_cast %72 : vector<1x1x16xf32> to vector<16xf32>
    %74 = vector.shape_cast %73 : vector<16xf32> to vector<1x1x16xf32>
    %75 = vector.extract_strided_slice %2 {offsets = [3, 3, 0], sizes = [1, 1, 16], strides = [1, 1, 1]} : vector<7x7x16xf32> to vector<1x1x16xf32>
    %76 = vector.shape_cast %75 : vector<1x1x16xf32> to vector<16xf32>
    %77 = vector.shape_cast %76 : vector<16xf32> to vector<1x1x16xf32>
    %78 = vector.extract_strided_slice %2 {offsets = [3, 4, 0], sizes = [1, 1, 16], strides = [1, 1, 1]} : vector<7x7x16xf32> to vector<1x1x16xf32>
    %79 = vector.shape_cast %78 : vector<1x1x16xf32> to vector<16xf32>
    %80 = vector.shape_cast %79 : vector<16xf32> to vector<1x1x16xf32>
    %81 = vector.extract_strided_slice %2 {offsets = [3, 5, 0], sizes = [1, 1, 16], strides = [1, 1, 1]} : vector<7x7x16xf32> to vector<1x1x16xf32>
    %82 = vector.shape_cast %81 : vector<1x1x16xf32> to vector<16xf32>
    %83 = vector.shape_cast %82 : vector<16xf32> to vector<1x1x16xf32>
    %84 = vector.extract_strided_slice %2 {offsets = [3, 6, 0], sizes = [1, 1, 16], strides = [1, 1, 1]} : vector<7x7x16xf32> to vector<1x1x16xf32>
    %85 = vector.shape_cast %84 : vector<1x1x16xf32> to vector<16xf32>
    %86 = vector.shape_cast %85 : vector<16xf32> to vector<1x1x16xf32>
    %87 = vector.extract_strided_slice %2 {offsets = [4, 0, 0], sizes = [1, 1, 16], strides = [1, 1, 1]} : vector<7x7x16xf32> to vector<1x1x16xf32>
    %88 = vector.shape_cast %87 : vector<1x1x16xf32> to vector<16xf32>
    %89 = vector.shape_cast %88 : vector<16xf32> to vector<1x1x16xf32>
    %90 = vector.extract_strided_slice %2 {offsets = [4, 1, 0], sizes = [1, 1, 16], strides = [1, 1, 1]} : vector<7x7x16xf32> to vector<1x1x16xf32>
    %91 = vector.shape_cast %90 : vector<1x1x16xf32> to vector<16xf32>
    %92 = vector.shape_cast %91 : vector<16xf32> to vector<1x1x16xf32>
    %93 = vector.extract_strided_slice %2 {offsets = [4, 2, 0], sizes = [1, 1, 16], strides = [1, 1, 1]} : vector<7x7x16xf32> to vector<1x1x16xf32>
    %94 = vector.shape_cast %93 : vector<1x1x16xf32> to vector<16xf32>
    %95 = vector.shape_cast %94 : vector<16xf32> to vector<1x1x16xf32>
    %96 = vector.extract_strided_slice %2 {offsets = [4, 3, 0], sizes = [1, 1, 16], strides = [1, 1, 1]} : vector<7x7x16xf32> to vector<1x1x16xf32>
    %97 = vector.shape_cast %96 : vector<1x1x16xf32> to vector<16xf32>
    %98 = vector.shape_cast %97 : vector<16xf32> to vector<1x1x16xf32>
    %99 = vector.extract_strided_slice %2 {offsets = [4, 4, 0], sizes = [1, 1, 16], strides = [1, 1, 1]} : vector<7x7x16xf32> to vector<1x1x16xf32>
    %100 = vector.shape_cast %99 : vector<1x1x16xf32> to vector<16xf32>
    %101 = vector.shape_cast %100 : vector<16xf32> to vector<1x1x16xf32>
    %102 = vector.extract_strided_slice %2 {offsets = [4, 5, 0], sizes = [1, 1, 16], strides = [1, 1, 1]} : vector<7x7x16xf32> to vector<1x1x16xf32>
    %103 = vector.shape_cast %102 : vector<1x1x16xf32> to vector<16xf32>
    %104 = vector.shape_cast %103 : vector<16xf32> to vector<1x1x16xf32>
    %105 = vector.extract_strided_slice %2 {offsets = [4, 6, 0], sizes = [1, 1, 16], strides = [1, 1, 1]} : vector<7x7x16xf32> to vector<1x1x16xf32>
    %106 = vector.shape_cast %105 : vector<1x1x16xf32> to vector<16xf32>
    %107 = vector.shape_cast %106 : vector<16xf32> to vector<1x1x16xf32>
    %108 = vector.extract_strided_slice %2 {offsets = [5, 0, 0], sizes = [1, 1, 16], strides = [1, 1, 1]} : vector<7x7x16xf32> to vector<1x1x16xf32>
    %109 = vector.shape_cast %108 : vector<1x1x16xf32> to vector<16xf32>
    %110 = vector.shape_cast %109 : vector<16xf32> to vector<1x1x16xf32>
    %111 = vector.extract_strided_slice %2 {offsets = [5, 1, 0], sizes = [1, 1, 16], strides = [1, 1, 1]} : vector<7x7x16xf32> to vector<1x1x16xf32>
    %112 = vector.shape_cast %111 : vector<1x1x16xf32> to vector<16xf32>
    %113 = vector.shape_cast %112 : vector<16xf32> to vector<1x1x16xf32>
    %114 = vector.extract_strided_slice %2 {offsets = [5, 2, 0], sizes = [1, 1, 16], strides = [1, 1, 1]} : vector<7x7x16xf32> to vector<1x1x16xf32>
    %115 = vector.shape_cast %114 : vector<1x1x16xf32> to vector<16xf32>
    %116 = vector.shape_cast %115 : vector<16xf32> to vector<1x1x16xf32>
    %117 = vector.extract_strided_slice %2 {offsets = [5, 3, 0], sizes = [1, 1, 16], strides = [1, 1, 1]} : vector<7x7x16xf32> to vector<1x1x16xf32>
    %118 = vector.shape_cast %117 : vector<1x1x16xf32> to vector<16xf32>
    %119 = vector.shape_cast %118 : vector<16xf32> to vector<1x1x16xf32>
    %120 = vector.extract_strided_slice %2 {offsets = [5, 4, 0], sizes = [1, 1, 16], strides = [1, 1, 1]} : vector<7x7x16xf32> to vector<1x1x16xf32>
    %121 = vector.shape_cast %120 : vector<1x1x16xf32> to vector<16xf32>
    %122 = vector.shape_cast %121 : vector<16xf32> to vector<1x1x16xf32>
    %123 = vector.extract_strided_slice %2 {offsets = [5, 5, 0], sizes = [1, 1, 16], strides = [1, 1, 1]} : vector<7x7x16xf32> to vector<1x1x16xf32>
    %124 = vector.shape_cast %123 : vector<1x1x16xf32> to vector<16xf32>
    %125 = vector.shape_cast %124 : vector<16xf32> to vector<1x1x16xf32>
    %126 = vector.extract_strided_slice %2 {offsets = [5, 6, 0], sizes = [1, 1, 16], strides = [1, 1, 1]} : vector<7x7x16xf32> to vector<1x1x16xf32>
    %127 = vector.shape_cast %126 : vector<1x1x16xf32> to vector<16xf32>
    %128 = vector.shape_cast %127 : vector<16xf32> to vector<1x1x16xf32>
    %129 = vector.extract_strided_slice %2 {offsets = [6, 0, 0], sizes = [1, 1, 16], strides = [1, 1, 1]} : vector<7x7x16xf32> to vector<1x1x16xf32>
    %130 = vector.shape_cast %129 : vector<1x1x16xf32> to vector<16xf32>
    %131 = vector.shape_cast %130 : vector<16xf32> to vector<1x1x16xf32>
    %132 = vector.extract_strided_slice %2 {offsets = [6, 1, 0], sizes = [1, 1, 16], strides = [1, 1, 1]} : vector<7x7x16xf32> to vector<1x1x16xf32>
    %133 = vector.shape_cast %132 : vector<1x1x16xf32> to vector<16xf32>
    %134 = vector.shape_cast %133 : vector<16xf32> to vector<1x1x16xf32>
    %135 = vector.extract_strided_slice %2 {offsets = [6, 2, 0], sizes = [1, 1, 16], strides = [1, 1, 1]} : vector<7x7x16xf32> to vector<1x1x16xf32>
    %136 = vector.shape_cast %135 : vector<1x1x16xf32> to vector<16xf32>
    %137 = vector.shape_cast %136 : vector<16xf32> to vector<1x1x16xf32>
    %138 = vector.extract_strided_slice %2 {offsets = [6, 3, 0], sizes = [1, 1, 16], strides = [1, 1, 1]} : vector<7x7x16xf32> to vector<1x1x16xf32>
    %139 = vector.shape_cast %138 : vector<1x1x16xf32> to vector<16xf32>
    %140 = vector.shape_cast %139 : vector<16xf32> to vector<1x1x16xf32>
    %141 = vector.extract_strided_slice %2 {offsets = [6, 4, 0], sizes = [1, 1, 16], strides = [1, 1, 1]} : vector<7x7x16xf32> to vector<1x1x16xf32>
    %142 = vector.shape_cast %141 : vector<1x1x16xf32> to vector<16xf32>
    %143 = vector.shape_cast %142 : vector<16xf32> to vector<1x1x16xf32>
    %144 = vector.extract_strided_slice %2 {offsets = [6, 5, 0], sizes = [1, 1, 16], strides = [1, 1, 1]} : vector<7x7x16xf32> to vector<1x1x16xf32>
    %145 = vector.shape_cast %144 : vector<1x1x16xf32> to vector<16xf32>
    %146 = vector.shape_cast %145 : vector<16xf32> to vector<1x1x16xf32>
    %147 = vector.extract_strided_slice %2 {offsets = [6, 6, 0], sizes = [1, 1, 16], strides = [1, 1, 1]} : vector<7x7x16xf32> to vector<1x1x16xf32>
    %148 = vector.shape_cast %147 : vector<1x1x16xf32> to vector<16xf32>
    %149 = vector.shape_cast %148 : vector<16xf32> to vector<1x1x16xf32>
    %c0_2 = arith.constant 0 : index
    %150 = arith.index_cast %1 : i32 to index
    %c0_3 = arith.constant 0 : index
    %c0_4 = arith.constant 0 : index
    %151 = vector.load %arg2[%c0_2, %150, %c0_3, %c0_4] : memref<1x14x14x16xf32, #tpu.memory_space<vmem>>, vector<1x14x8x16xf32>
    %152 = vector.shape_cast %151 : vector<1x14x8x16xf32> to vector<14x8x16xf32>
    %153 = vector.extract_strided_slice %152 {offsets = [0, 0, 0], sizes = [8, 8, 16], strides = [1, 1, 1]} : vector<14x8x16xf32> to vector<8x8x16xf32>
    %154 = vector.broadcast %5 : vector<1x1x16xf32> to vector<8x8x16xf32>
    %155 = arith.mulf %153, %154 : vector<8x8x16xf32>
    %156 = vector.extract_strided_slice %152 {offsets = [1, 0, 0], sizes = [8, 8, 16], strides = [1, 1, 1]} : vector<14x8x16xf32> to vector<8x8x16xf32>
    %157 = vector.broadcast %8 : vector<1x1x16xf32> to vector<8x8x16xf32>
    %158 = arith.mulf %156, %157 : vector<8x8x16xf32>
    %159 = vector.extract_strided_slice %152 {offsets = [2, 0, 0], sizes = [8, 8, 16], strides = [1, 1, 1]} : vector<14x8x16xf32> to vector<8x8x16xf32>
    %160 = vector.broadcast %11 : vector<1x1x16xf32> to vector<8x8x16xf32>
    %161 = arith.mulf %159, %160 : vector<8x8x16xf32>
    %162 = arith.addf %155, %161 : vector<8x8x16xf32>
    %163 = vector.extract_strided_slice %152 {offsets = [3, 0, 0], sizes = [8, 8, 16], strides = [1, 1, 1]} : vector<14x8x16xf32> to vector<8x8x16xf32>
    %164 = vector.broadcast %14 : vector<1x1x16xf32> to vector<8x8x16xf32>
    %165 = arith.mulf %163, %164 : vector<8x8x16xf32>
    %166 = arith.addf %158, %165 : vector<8x8x16xf32>
    %167 = vector.extract_strided_slice %152 {offsets = [4, 0, 0], sizes = [8, 8, 16], strides = [1, 1, 1]} : vector<14x8x16xf32> to vector<8x8x16xf32>
    %168 = vector.broadcast %17 : vector<1x1x16xf32> to vector<8x8x16xf32>
    %169 = arith.mulf %167, %168 : vector<8x8x16xf32>
    %170 = arith.addf %162, %169 : vector<8x8x16xf32>
    %171 = vector.extract_strided_slice %152 {offsets = [5, 0, 0], sizes = [8, 8, 16], strides = [1, 1, 1]} : vector<14x8x16xf32> to vector<8x8x16xf32>
    %172 = vector.broadcast %20 : vector<1x1x16xf32> to vector<8x8x16xf32>
    %173 = arith.mulf %171, %172 : vector<8x8x16xf32>
    %174 = arith.addf %166, %173 : vector<8x8x16xf32>
    %175 = vector.extract_strided_slice %152 {offsets = [6, 0, 0], sizes = [8, 8, 16], strides = [1, 1, 1]} : vector<14x8x16xf32> to vector<8x8x16xf32>
    %176 = vector.broadcast %23 : vector<1x1x16xf32> to vector<8x8x16xf32>
    %177 = arith.mulf %175, %176 : vector<8x8x16xf32>
    %178 = arith.addf %170, %177 : vector<8x8x16xf32>
    %c0_5 = arith.constant 0 : index
    %179 = arith.index_cast %1 : i32 to index
    %c1 = arith.constant 1 : index
    %c0_6 = arith.constant 0 : index
    %180 = vector.load %arg2[%c0_5, %179, %c1, %c0_6] : memref<1x14x14x16xf32, #tpu.memory_space<vmem>>, vector<1x14x8x16xf32>
    %181 = vector.shape_cast %180 : vector<1x14x8x16xf32> to vector<14x8x16xf32>
    %182 = vector.extract_strided_slice %181 {offsets = [0, 0, 0], sizes = [8, 8, 16], strides = [1, 1, 1]} : vector<14x8x16xf32> to vector<8x8x16xf32>
    %183 = vector.broadcast %26 : vector<1x1x16xf32> to vector<8x8x16xf32>
    %184 = arith.mulf %182, %183 : vector<8x8x16xf32>
    %185 = arith.addf %178, %184 : vector<8x8x16xf32>
    %186 = vector.extract_strided_slice %181 {offsets = [1, 0, 0], sizes = [8, 8, 16], strides = [1, 1, 1]} : vector<14x8x16xf32> to vector<8x8x16xf32>
    %187 = vector.broadcast %29 : vector<1x1x16xf32> to vector<8x8x16xf32>
    %188 = arith.mulf %186, %187 : vector<8x8x16xf32>
    %189 = arith.addf %174, %188 : vector<8x8x16xf32>
    %190 = vector.extract_strided_slice %181 {offsets = [2, 0, 0], sizes = [8, 8, 16], strides = [1, 1, 1]} : vector<14x8x16xf32> to vector<8x8x16xf32>
    %191 = vector.broadcast %32 : vector<1x1x16xf32> to vector<8x8x16xf32>
    %192 = arith.mulf %190, %191 : vector<8x8x16xf32>
    %193 = arith.addf %185, %192 : vector<8x8x16xf32>
    %194 = vector.extract_strided_slice %181 {offsets = [3, 0, 0], sizes = [8, 8, 16], strides = [1, 1, 1]} : vector<14x8x16xf32> to vector<8x8x16xf32>
    %195 = vector.broadcast %35 : vector<1x1x16xf32> to vector<8x8x16xf32>
    %196 = arith.mulf %194, %195 : vector<8x8x16xf32>
    %197 = arith.addf %189, %196 : vector<8x8x16xf32>
    %198 = vector.extract_strided_slice %181 {offsets = [4, 0, 0], sizes = [8, 8, 16], strides = [1, 1, 1]} : vector<14x8x16xf32> to vector<8x8x16xf32>
    %199 = vector.broadcast %38 : vector<1x1x16xf32> to vector<8x8x16xf32>
    %200 = arith.mulf %198, %199 : vector<8x8x16xf32>
    %201 = arith.addf %193, %200 : vector<8x8x16xf32>
    %202 = vector.extract_strided_slice %181 {offsets = [5, 0, 0], sizes = [8, 8, 16], strides = [1, 1, 1]} : vector<14x8x16xf32> to vector<8x8x16xf32>
    %203 = vector.broadcast %41 : vector<1x1x16xf32> to vector<8x8x16xf32>
    %204 = arith.mulf %202, %203 : vector<8x8x16xf32>
    %205 = arith.addf %197, %204 : vector<8x8x16xf32>
    %206 = vector.extract_strided_slice %181 {offsets = [6, 0, 0], sizes = [8, 8, 16], strides = [1, 1, 1]} : vector<14x8x16xf32> to vector<8x8x16xf32>
    %207 = vector.broadcast %44 : vector<1x1x16xf32> to vector<8x8x16xf32>
    %208 = arith.mulf %206, %207 : vector<8x8x16xf32>
    %209 = arith.addf %201, %208 : vector<8x8x16xf32>
    %c0_7 = arith.constant 0 : index
    %210 = arith.index_cast %1 : i32 to index
    %c2 = arith.constant 2 : index
    %c0_8 = arith.constant 0 : index
    %211 = vector.load %arg2[%c0_7, %210, %c2, %c0_8] : memref<1x14x14x16xf32, #tpu.memory_space<vmem>>, vector<1x14x8x16xf32>
    %212 = vector.shape_cast %211 : vector<1x14x8x16xf32> to vector<14x8x16xf32>
    %213 = vector.extract_strided_slice %212 {offsets = [0, 0, 0], sizes = [8, 8, 16], strides = [1, 1, 1]} : vector<14x8x16xf32> to vector<8x8x16xf32>
    %214 = vector.broadcast %47 : vector<1x1x16xf32> to vector<8x8x16xf32>
    %215 = arith.mulf %213, %214 : vector<8x8x16xf32>
    %216 = arith.addf %209, %215 : vector<8x8x16xf32>
    %217 = vector.extract_strided_slice %212 {offsets = [1, 0, 0], sizes = [8, 8, 16], strides = [1, 1, 1]} : vector<14x8x16xf32> to vector<8x8x16xf32>
    %218 = vector.broadcast %50 : vector<1x1x16xf32> to vector<8x8x16xf32>
    %219 = arith.mulf %217, %218 : vector<8x8x16xf32>
    %220 = arith.addf %205, %219 : vector<8x8x16xf32>
    %221 = vector.extract_strided_slice %212 {offsets = [2, 0, 0], sizes = [8, 8, 16], strides = [1, 1, 1]} : vector<14x8x16xf32> to vector<8x8x16xf32>
    %222 = vector.broadcast %53 : vector<1x1x16xf32> to vector<8x8x16xf32>
    %223 = arith.mulf %221, %222 : vector<8x8x16xf32>
    %224 = arith.addf %216, %223 : vector<8x8x16xf32>
    %225 = vector.extract_strided_slice %212 {offsets = [3, 0, 0], sizes = [8, 8, 16], strides = [1, 1, 1]} : vector<14x8x16xf32> to vector<8x8x16xf32>
    %226 = vector.broadcast %56 : vector<1x1x16xf32> to vector<8x8x16xf32>
    %227 = arith.mulf %225, %226 : vector<8x8x16xf32>
    %228 = arith.addf %220, %227 : vector<8x8x16xf32>
    %229 = vector.extract_strided_slice %212 {offsets = [4, 0, 0], sizes = [8, 8, 16], strides = [1, 1, 1]} : vector<14x8x16xf32> to vector<8x8x16xf32>
    %230 = vector.broadcast %59 : vector<1x1x16xf32> to vector<8x8x16xf32>
    %231 = arith.mulf %229, %230 : vector<8x8x16xf32>
    %232 = arith.addf %224, %231 : vector<8x8x16xf32>
    %233 = vector.extract_strided_slice %212 {offsets = [5, 0, 0], sizes = [8, 8, 16], strides = [1, 1, 1]} : vector<14x8x16xf32> to vector<8x8x16xf32>
    %234 = vector.broadcast %62 : vector<1x1x16xf32> to vector<8x8x16xf32>
    %235 = arith.mulf %233, %234 : vector<8x8x16xf32>
    %236 = arith.addf %228, %235 : vector<8x8x16xf32>
    %237 = vector.extract_strided_slice %212 {offsets = [6, 0, 0], sizes = [8, 8, 16], strides = [1, 1, 1]} : vector<14x8x16xf32> to vector<8x8x16xf32>
    %238 = vector.broadcast %65 : vector<1x1x16xf32> to vector<8x8x16xf32>
    %239 = arith.mulf %237, %238 : vector<8x8x16xf32>
    %240 = arith.addf %232, %239 : vector<8x8x16xf32>
    %c0_9 = arith.constant 0 : index
    %241 = arith.index_cast %1 : i32 to index
    %c3 = arith.constant 3 : index
    %c0_10 = arith.constant 0 : index
    %242 = vector.load %arg2[%c0_9, %241, %c3, %c0_10] : memref<1x14x14x16xf32, #tpu.memory_space<vmem>>, vector<1x14x8x16xf32>
    %243 = vector.shape_cast %242 : vector<1x14x8x16xf32> to vector<14x8x16xf32>
    %244 = vector.extract_strided_slice %243 {offsets = [0, 0, 0], sizes = [8, 8, 16], strides = [1, 1, 1]} : vector<14x8x16xf32> to vector<8x8x16xf32>
    %245 = vector.broadcast %68 : vector<1x1x16xf32> to vector<8x8x16xf32>
    %246 = arith.mulf %244, %245 : vector<8x8x16xf32>
    %247 = arith.addf %240, %246 : vector<8x8x16xf32>
    %248 = vector.extract_strided_slice %243 {offsets = [1, 0, 0], sizes = [8, 8, 16], strides = [1, 1, 1]} : vector<14x8x16xf32> to vector<8x8x16xf32>
    %249 = vector.broadcast %71 : vector<1x1x16xf32> to vector<8x8x16xf32>
    %250 = arith.mulf %248, %249 : vector<8x8x16xf32>
    %251 = arith.addf %236, %250 : vector<8x8x16xf32>
    %252 = vector.extract_strided_slice %243 {offsets = [2, 0, 0], sizes = [8, 8, 16], strides = [1, 1, 1]} : vector<14x8x16xf32> to vector<8x8x16xf32>
    %253 = vector.broadcast %74 : vector<1x1x16xf32> to vector<8x8x16xf32>
    %254 = arith.mulf %252, %253 : vector<8x8x16xf32>
    %255 = arith.addf %247, %254 : vector<8x8x16xf32>
    %256 = vector.extract_strided_slice %243 {offsets = [3, 0, 0], sizes = [8, 8, 16], strides = [1, 1, 1]} : vector<14x8x16xf32> to vector<8x8x16xf32>
    %257 = vector.broadcast %77 : vector<1x1x16xf32> to vector<8x8x16xf32>
    %258 = arith.mulf %256, %257 : vector<8x8x16xf32>
    %259 = arith.addf %251, %258 : vector<8x8x16xf32>
    %260 = vector.extract_strided_slice %243 {offsets = [4, 0, 0], sizes = [8, 8, 16], strides = [1, 1, 1]} : vector<14x8x16xf32> to vector<8x8x16xf32>
    %261 = vector.broadcast %80 : vector<1x1x16xf32> to vector<8x8x16xf32>
    %262 = arith.mulf %260, %261 : vector<8x8x16xf32>
    %263 = arith.addf %255, %262 : vector<8x8x16xf32>
    %264 = vector.extract_strided_slice %243 {offsets = [5, 0, 0], sizes = [8, 8, 16], strides = [1, 1, 1]} : vector<14x8x16xf32> to vector<8x8x16xf32>
    %265 = vector.broadcast %83 : vector<1x1x16xf32> to vector<8x8x16xf32>
    %266 = arith.mulf %264, %265 : vector<8x8x16xf32>
    %267 = arith.addf %259, %266 : vector<8x8x16xf32>
    %268 = vector.extract_strided_slice %243 {offsets = [6, 0, 0], sizes = [8, 8, 16], strides = [1, 1, 1]} : vector<14x8x16xf32> to vector<8x8x16xf32>
    %269 = vector.broadcast %86 : vector<1x1x16xf32> to vector<8x8x16xf32>
    %270 = arith.mulf %268, %269 : vector<8x8x16xf32>
    %271 = arith.addf %263, %270 : vector<8x8x16xf32>
    %c0_11 = arith.constant 0 : index
    %272 = arith.index_cast %1 : i32 to index
    %c4 = arith.constant 4 : index
    %c0_12 = arith.constant 0 : index
    %273 = vector.load %arg2[%c0_11, %272, %c4, %c0_12] : memref<1x14x14x16xf32, #tpu.memory_space<vmem>>, vector<1x14x8x16xf32>
    %274 = vector.shape_cast %273 : vector<1x14x8x16xf32> to vector<14x8x16xf32>
    %275 = vector.extract_strided_slice %274 {offsets = [0, 0, 0], sizes = [8, 8, 16], strides = [1, 1, 1]} : vector<14x8x16xf32> to vector<8x8x16xf32>
    %276 = vector.broadcast %89 : vector<1x1x16xf32> to vector<8x8x16xf32>
    %277 = arith.mulf %275, %276 : vector<8x8x16xf32>
    %278 = arith.addf %271, %277 : vector<8x8x16xf32>
    %279 = vector.extract_strided_slice %274 {offsets = [1, 0, 0], sizes = [8, 8, 16], strides = [1, 1, 1]} : vector<14x8x16xf32> to vector<8x8x16xf32>
    %280 = vector.broadcast %92 : vector<1x1x16xf32> to vector<8x8x16xf32>
    %281 = arith.mulf %279, %280 : vector<8x8x16xf32>
    %282 = arith.addf %267, %281 : vector<8x8x16xf32>
    %283 = vector.extract_strided_slice %274 {offsets = [2, 0, 0], sizes = [8, 8, 16], strides = [1, 1, 1]} : vector<14x8x16xf32> to vector<8x8x16xf32>
    %284 = vector.broadcast %95 : vector<1x1x16xf32> to vector<8x8x16xf32>
    %285 = arith.mulf %283, %284 : vector<8x8x16xf32>
    %286 = arith.addf %278, %285 : vector<8x8x16xf32>
    %287 = vector.extract_strided_slice %274 {offsets = [3, 0, 0], sizes = [8, 8, 16], strides = [1, 1, 1]} : vector<14x8x16xf32> to vector<8x8x16xf32>
    %288 = vector.broadcast %98 : vector<1x1x16xf32> to vector<8x8x16xf32>
    %289 = arith.mulf %287, %288 : vector<8x8x16xf32>
    %290 = arith.addf %282, %289 : vector<8x8x16xf32>
    %291 = vector.extract_strided_slice %274 {offsets = [4, 0, 0], sizes = [8, 8, 16], strides = [1, 1, 1]} : vector<14x8x16xf32> to vector<8x8x16xf32>
    %292 = vector.broadcast %101 : vector<1x1x16xf32> to vector<8x8x16xf32>
    %293 = arith.mulf %291, %292 : vector<8x8x16xf32>
    %294 = arith.addf %286, %293 : vector<8x8x16xf32>
    %295 = vector.extract_strided_slice %274 {offsets = [5, 0, 0], sizes = [8, 8, 16], strides = [1, 1, 1]} : vector<14x8x16xf32> to vector<8x8x16xf32>
    %296 = vector.broadcast %104 : vector<1x1x16xf32> to vector<8x8x16xf32>
    %297 = arith.mulf %295, %296 : vector<8x8x16xf32>
    %298 = arith.addf %290, %297 : vector<8x8x16xf32>
    %299 = vector.extract_strided_slice %274 {offsets = [6, 0, 0], sizes = [8, 8, 16], strides = [1, 1, 1]} : vector<14x8x16xf32> to vector<8x8x16xf32>
    %300 = vector.broadcast %107 : vector<1x1x16xf32> to vector<8x8x16xf32>
    %301 = arith.mulf %299, %300 : vector<8x8x16xf32>
    %302 = arith.addf %294, %301 : vector<8x8x16xf32>
    %c0_13 = arith.constant 0 : index
    %303 = arith.index_cast %1 : i32 to index
    %c5 = arith.constant 5 : index
    %c0_14 = arith.constant 0 : index
    %304 = vector.load %arg2[%c0_13, %303, %c5, %c0_14] : memref<1x14x14x16xf32, #tpu.memory_space<vmem>>, vector<1x14x8x16xf32>
    %305 = vector.shape_cast %304 : vector<1x14x8x16xf32> to vector<14x8x16xf32>
    %306 = vector.extract_strided_slice %305 {offsets = [0, 0, 0], sizes = [8, 8, 16], strides = [1, 1, 1]} : vector<14x8x16xf32> to vector<8x8x16xf32>
    %307 = vector.broadcast %110 : vector<1x1x16xf32> to vector<8x8x16xf32>
    %308 = arith.mulf %306, %307 : vector<8x8x16xf32>
    %309 = arith.addf %302, %308 : vector<8x8x16xf32>
    %310 = vector.extract_strided_slice %305 {offsets = [1, 0, 0], sizes = [8, 8, 16], strides = [1, 1, 1]} : vector<14x8x16xf32> to vector<8x8x16xf32>
    %311 = vector.broadcast %113 : vector<1x1x16xf32> to vector<8x8x16xf32>
    %312 = arith.mulf %310, %311 : vector<8x8x16xf32>
    %313 = arith.addf %298, %312 : vector<8x8x16xf32>
    %314 = vector.extract_strided_slice %305 {offsets = [2, 0, 0], sizes = [8, 8, 16], strides = [1, 1, 1]} : vector<14x8x16xf32> to vector<8x8x16xf32>
    %315 = vector.broadcast %116 : vector<1x1x16xf32> to vector<8x8x16xf32>
    %316 = arith.mulf %314, %315 : vector<8x8x16xf32>
    %317 = arith.addf %309, %316 : vector<8x8x16xf32>
    %318 = vector.extract_strided_slice %305 {offsets = [3, 0, 0], sizes = [8, 8, 16], strides = [1, 1, 1]} : vector<14x8x16xf32> to vector<8x8x16xf32>
    %319 = vector.broadcast %119 : vector<1x1x16xf32> to vector<8x8x16xf32>
    %320 = arith.mulf %318, %319 : vector<8x8x16xf32>
    %321 = arith.addf %313, %320 : vector<8x8x16xf32>
    %322 = vector.extract_strided_slice %305 {offsets = [4, 0, 0], sizes = [8, 8, 16], strides = [1, 1, 1]} : vector<14x8x16xf32> to vector<8x8x16xf32>
    %323 = vector.broadcast %122 : vector<1x1x16xf32> to vector<8x8x16xf32>
    %324 = arith.mulf %322, %323 : vector<8x8x16xf32>
    %325 = arith.addf %317, %324 : vector<8x8x16xf32>
    %326 = vector.extract_strided_slice %305 {offsets = [5, 0, 0], sizes = [8, 8, 16], strides = [1, 1, 1]} : vector<14x8x16xf32> to vector<8x8x16xf32>
    %327 = vector.broadcast %125 : vector<1x1x16xf32> to vector<8x8x16xf32>
    %328 = arith.mulf %326, %327 : vector<8x8x16xf32>
    %329 = arith.addf %321, %328 : vector<8x8x16xf32>
    %330 = vector.extract_strided_slice %305 {offsets = [6, 0, 0], sizes = [8, 8, 16], strides = [1, 1, 1]} : vector<14x8x16xf32> to vector<8x8x16xf32>
    %331 = vector.broadcast %128 : vector<1x1x16xf32> to vector<8x8x16xf32>
    %332 = arith.mulf %330, %331 : vector<8x8x16xf32>
    %333 = arith.addf %325, %332 : vector<8x8x16xf32>
    %c0_15 = arith.constant 0 : index
    %334 = arith.index_cast %1 : i32 to index
    %c6 = arith.constant 6 : index
    %c0_16 = arith.constant 0 : index
    %335 = vector.load %arg2[%c0_15, %334, %c6, %c0_16] : memref<1x14x14x16xf32, #tpu.memory_space<vmem>>, vector<1x14x8x16xf32>
    %336 = vector.shape_cast %335 : vector<1x14x8x16xf32> to vector<14x8x16xf32>
    %337 = vector.extract_strided_slice %336 {offsets = [0, 0, 0], sizes = [8, 8, 16], strides = [1, 1, 1]} : vector<14x8x16xf32> to vector<8x8x16xf32>
    %338 = vector.broadcast %131 : vector<1x1x16xf32> to vector<8x8x16xf32>
    %339 = arith.mulf %337, %338 : vector<8x8x16xf32>
    %340 = arith.addf %333, %339 : vector<8x8x16xf32>
    %341 = vector.extract_strided_slice %336 {offsets = [1, 0, 0], sizes = [8, 8, 16], strides = [1, 1, 1]} : vector<14x8x16xf32> to vector<8x8x16xf32>
    %342 = vector.broadcast %134 : vector<1x1x16xf32> to vector<8x8x16xf32>
    %343 = arith.mulf %341, %342 : vector<8x8x16xf32>
    %344 = arith.addf %329, %343 : vector<8x8x16xf32>
    %345 = vector.extract_strided_slice %336 {offsets = [2, 0, 0], sizes = [8, 8, 16], strides = [1, 1, 1]} : vector<14x8x16xf32> to vector<8x8x16xf32>
    %346 = vector.broadcast %137 : vector<1x1x16xf32> to vector<8x8x16xf32>
    %347 = arith.mulf %345, %346 : vector<8x8x16xf32>
    %348 = arith.addf %340, %347 : vector<8x8x16xf32>
    %349 = vector.extract_strided_slice %336 {offsets = [3, 0, 0], sizes = [8, 8, 16], strides = [1, 1, 1]} : vector<14x8x16xf32> to vector<8x8x16xf32>
    %350 = vector.broadcast %140 : vector<1x1x16xf32> to vector<8x8x16xf32>
    %351 = arith.mulf %349, %350 : vector<8x8x16xf32>
    %352 = arith.addf %344, %351 : vector<8x8x16xf32>
    %353 = vector.extract_strided_slice %336 {offsets = [4, 0, 0], sizes = [8, 8, 16], strides = [1, 1, 1]} : vector<14x8x16xf32> to vector<8x8x16xf32>
    %354 = vector.broadcast %143 : vector<1x1x16xf32> to vector<8x8x16xf32>
    %355 = arith.mulf %353, %354 : vector<8x8x16xf32>
    %356 = arith.addf %348, %355 : vector<8x8x16xf32>
    %357 = vector.extract_strided_slice %336 {offsets = [5, 0, 0], sizes = [8, 8, 16], strides = [1, 1, 1]} : vector<14x8x16xf32> to vector<8x8x16xf32>
    %358 = vector.broadcast %146 : vector<1x1x16xf32> to vector<8x8x16xf32>
    %359 = arith.mulf %357, %358 : vector<8x8x16xf32>
    %360 = arith.addf %352, %359 : vector<8x8x16xf32>
    %361 = vector.extract_strided_slice %336 {offsets = [6, 0, 0], sizes = [8, 8, 16], strides = [1, 1, 1]} : vector<14x8x16xf32> to vector<8x8x16xf32>
    %362 = vector.broadcast %149 : vector<1x1x16xf32> to vector<8x8x16xf32>
    %363 = arith.mulf %361, %362 : vector<8x8x16xf32>
    %364 = arith.addf %356, %363 : vector<8x8x16xf32>
    %365 = arith.addf %364, %360 : vector<8x8x16xf32>
    %c0_17 = arith.constant 0 : index
    %c0_18 = arith.constant 0 : index
    %366 = vector.load %arg4[%c0_17, %c0_18] : memref<1x16xf32, #tpu.memory_space<vmem>>, vector<1x16xf32>
    %367 = vector.shape_cast %366 : vector<1x16xf32> to vector<1x1x16xf32>
    %368 = vector.broadcast %367 : vector<1x1x16xf32> to vector<8x8x16xf32>
    %369 = arith.addf %365, %368 : vector<8x8x16xf32>
    %cst = arith.constant dense<0.000000e+00> : vector<8x8xf32>
    %370 = vector.multi_reduction <add>, %369, %cst [2] : vector<8x8x16xf32> to vector<8x8xf32>
    %371 = vector.shape_cast %370 : vector<8x8xf32> to vector<8x8x1xf32>
    %cst_19 = arith.constant 1.600000e+01 : f32
    %372 = vector.broadcast %cst_19 : f32 to vector<8x8x1xf32>
    %373 = arith.divf %371, %372 : vector<8x8x1xf32>
    %374 = vector.broadcast %373 : vector<8x8x1xf32> to vector<8x8x16xf32>
    %375 = arith.subf %369, %374 : vector<8x8x16xf32>
    %376 = arith.mulf %375, %375 : vector<8x8x16xf32>
    %cst_20 = arith.constant dense<0.000000e+00> : vector<8x8xf32>
    %377 = vector.multi_reduction <add>, %376, %cst_20 [2] : vector<8x8x16xf32> to vector<8x8xf32>
    %378 = vector.shape_cast %377 : vector<8x8xf32> to vector<8x8x1xf32>
    %cst_21 = arith.constant 1.600000e+01 : f32
    %379 = vector.broadcast %cst_21 : f32 to vector<8x8x1xf32>
    %380 = arith.divf %378, %379 : vector<8x8x1xf32>
    %cst_22 = arith.constant 9.99999997E-7 : f32
    %381 = vector.broadcast %cst_22 : f32 to vector<8x8x1xf32>
    %382 = arith.addf %380, %381 : vector<8x8x1xf32>
    %383 = math.rsqrt %382 : vector<8x8x1xf32>
    %384 = vector.broadcast %383 : vector<8x8x1xf32> to vector<8x8x16xf32>
    %385 = arith.mulf %375, %384 : vector<8x8x16xf32>
    %386 = vector.shape_cast %385 : vector<8x8x16xf32> to vector<64x16xf32>
    %387 = arith.truncf %386 : vector<64x16xf32> to vector<64x16xbf16>
    %c0_23 = arith.constant 0 : index
    %c0_24 = arith.constant 0 : index
    %388 = vector.load %arg5[%c0_23, %c0_24] : memref<16x64xbf16, #tpu.memory_space<vmem>>, vector<16x64xbf16>
    %cst_25 = arith.constant dense<0.000000e+00> : vector<64x64xf32>
    %389 = tpu.matmul %387, %388, %cst_25 {dimension_numbers = #tpu.dot_dimension_numbers<[1], [0], [0], [1], [0, 0, 1, 1], [], []>} : vector<64x16xbf16>, vector<16x64xbf16>, vector<64x64xf32> -> vector<64x64xf32>
    %c0_26 = arith.constant 0 : index
    %c0_27 = arith.constant 0 : index
    %390 = vector.load %arg6[%c0_26, %c0_27] : memref<1x64xf32, #tpu.memory_space<vmem>>, vector<1x64xf32>
    %391 = vector.broadcast %390 : vector<1x64xf32> to vector<64x64xf32>
    %392 = arith.addf %389, %391 : vector<64x64xf32>
    %cst_28 = arith.constant 5.000000e-01 : f32
    %393 = vector.broadcast %cst_28 : f32 to vector<64x64xf32>
    %394 = arith.mulf %393, %392 : vector<64x64xf32>
    %cst_29 = arith.constant 0.707106769 : f32
    %395 = vector.broadcast %cst_29 : f32 to vector<64x64xf32>
    %396 = arith.mulf %392, %395 : vector<64x64xf32>
    %397 = math.erf %396 : vector<64x64xf32>
    %cst_30 = arith.constant 1.000000e+00 : f32
    %398 = vector.broadcast %cst_30 : f32 to vector<64x64xf32>
    %399 = arith.addf %398, %397 : vector<64x64xf32>
    %400 = arith.mulf %394, %399 : vector<64x64xf32>
    %401 = arith.truncf %400 : vector<64x64xf32> to vector<64x64xbf16>
    %c0_31 = arith.constant 0 : index
    %c0_32 = arith.constant 0 : index
    %402 = vector.load %arg7[%c0_31, %c0_32] : memref<64x16xbf16, #tpu.memory_space<vmem>>, vector<64x16xbf16>
    %cst_33 = arith.constant dense<0.000000e+00> : vector<64x16xf32>
    %403 = tpu.matmul %401, %402, %cst_33 {dimension_numbers = #tpu.dot_dimension_numbers<[1], [0], [0], [1], [0, 0, 1, 1], [], []>} : vector<64x64xbf16>, vector<64x16xbf16>, vector<64x16xf32> -> vector<64x16xf32>
    %c0_34 = arith.constant 0 : index
    %c0_35 = arith.constant 0 : index
    %404 = vector.load %arg8[%c0_34, %c0_35] : memref<1x16xf32, #tpu.memory_space<vmem>>, vector<1x16xf32>
    %405 = vector.broadcast %404 : vector<1x16xf32> to vector<64x16xf32>
    %406 = arith.addf %403, %405 : vector<64x16xf32>
    %407 = vector.shape_cast %406 : vector<64x16xf32> to vector<8x8x16xf32>
    %c3_i32 = arith.constant 3 : i32
    %408 = arith.addi %1, %c3_i32 : i32
    %c0_36 = arith.constant 0 : index
    %409 = arith.index_cast %408 : i32 to index
    %c3_37 = arith.constant 3 : index
    %c0_38 = arith.constant 0 : index
    %410 = vector.load %arg2[%c0_36, %409, %c3_37, %c0_38] : memref<1x14x14x16xf32, #tpu.memory_space<vmem>>, vector<1x8x8x16xf32>
    %411 = vector.shape_cast %410 : vector<1x8x8x16xf32> to vector<8x8x16xf32>
    %412 = arith.addf %411, %407 : vector<8x8x16xf32>
    %c0_39 = arith.constant 0 : index
    %c0_40 = arith.constant 0 : index
    %c0_41 = arith.constant 0 : index
    %c0_42 = arith.constant 0 : index
    %413 = vector.load %arg9[%c0_39, %c0_40, %c0_41, %c0_42] : memref<1x8x8x16xf32, #tpu.memory_space<vmem>>, vector<1x8x8x16xf32>
    %414 = vector.shape_cast %413 : vector<1x8x8x16xf32> to vector<8x8x16xf32>
    %415 = vector.shape_cast %412 : vector<8x8x16xf32> to vector<1x8x8x16xf32>
    tpu.vector_store %arg9[%c0_39, %c0_40, %c0_41, %c0_42], %415 {strides = array<i32>} : memref<1x8x8x16xf32, #tpu.memory_space<vmem>>, vector<1x8x8x16xf32>,
    return
  }
  func.func @transform_0(%arg0: i32, %arg1: i32) -> (i32, i32, i32, i32) {
    %c0_i32 = arith.constant 0 : i32
    %c0_i32_0 = arith.constant 0 : i32
    %c0_i32_1 = arith.constant 0 : i32
    %c0_i32_2 = arith.constant 0 : i32
    return %arg0, %c0_i32, %c0_i32_0, %c0_i32_1 : i32, i32, i32, i32
  }
  func.func @transform_1(%arg0: i32, %arg1: i32) -> (i32, i32, i32) {
    %c0_i32 = arith.constant 0 : i32
    %c0_i32_0 = arith.constant 0 : i32
    %c0_i32_1 = arith.constant 0 : i32
    %c0_i32_2 = arith.constant 0 : i32
    return %c0_i32, %c0_i32_0, %c0_i32_1 : i32, i32, i32
  }
  func.func @transform_2(%arg0: i32, %arg1: i32) -> (i32, i32) {
    %c0_i32 = arith.constant 0 : i32
    %c0_i32_0 = arith.constant 0 : i32
    %c0_i32_1 = arith.constant 0 : i32
    return %c0_i32, %c0_i32_0 : i32, i32
  }
  func.func @transform_3(%arg0: i32, %arg1: i32) -> (i32, i32) {
    %c0_i32 = arith.constant 0 : i32
    %c0_i32_0 = arith.constant 0 : i32
    %c0_i32_1 = arith.constant 0 : i32
    return %c0_i32, %c0_i32_0 : i32, i32
  }
  func.func @transform_4(%arg0: i32, %arg1: i32) -> (i32, i32) {
    %c0_i32 = arith.constant 0 : i32
    %c0_i32_0 = arith.constant 0 : i32
    %c0_i32_1 = arith.constant 0 : i32
    return %c0_i32, %c0_i32_0 : i32, i32
  }
  func.func @transform_5(%arg0: i32, %arg1: i32) -> (i32, i32) {
    %c0_i32 = arith.constant 0 : i32
    %c0_i32_0 = arith.constant 0 : i32
    %c0_i32_1 = arith.constant 0 : i32
    return %c0_i32, %c0_i32_0 : i32, i32
  }
  func.func @transform_6(%arg0: i32, %arg1: i32) -> (i32, i32) {
    %c0_i32 = arith.constant 0 : i32
    %c0_i32_0 = arith.constant 0 : i32
    %c0_i32_1 = arith.constant 0 : i32
    return %c0_i32, %c0_i32_0 : i32, i32
  }
  func.func @transform_7(%arg0: i32, %arg1: i32) -> (i32, i32, i32, i32) {
    %c0_i32 = arith.constant 0 : i32
    %c0_i32_0 = arith.constant 0 : i32
    %c0_i32_1 = arith.constant 0 : i32
    return %arg0, %arg1, %c0_i32, %c0_i32_0 : i32, i32, i32, i32
  }
}

</mosaic_0001>

<llo_original>
// kernel: tpu_custom_call.1
$region0: #{tpu_custom_call.1}
  #allocation0 [shape = 'u32[]', space=smem, size = 0x4, offset = 0x4, fixed_abs, tag = 'smem constant byte address 0x4 - core index']
  #allocation1 [shape = 'u32[144,128]{1,0:T(1,128)}', space=vmem, size = 0x12000, scoped, tag = 'internal scratch']
  %s0 = inlined_call_operand.hbm [shape: f32[2,14,14,16], index: 0, kind: input, shape index: {}]
  %s1 = inlined_call_operand.hbm [shape: f32[7,7,16], index: 1, kind: input, shape index: {}]
  %s2 = inlined_call_operand.hbm [shape: f32[1,16], index: 2, kind: input, shape index: {}]
  %s3 = inlined_call_operand.hbm [shape: bf16[16,64], index: 3, kind: input, shape index: {}]
  %s4 = inlined_call_operand.hbm [shape: f32[1,64], index: 4, kind: input, shape index: {}]
  %s5 = inlined_call_operand.hbm [shape: bf16[64,16], index: 5, kind: input, shape index: {}]
  %s6 = inlined_call_operand.hbm [shape: f32[1,16], index: 6, kind: input, shape index: {}]
  %s7 = inlined_call_operand.hbm [shape: f32[2,8,8,16], index: 7, kind: output, shape index: {}]
  %s8 = sld [smem:[#allocation0]]
  $region89: #{tpu_custom_call.1} parent=0
    _
  %s10 = ssub.s32 1, %s8
  %s11 = scalar_select 0, %s10, %s8
  $region1: #{tpu_custom_call.1} parent=0
    #allocation2 [shape = 'u8[229376]{0}', space=vmem, size = 0x38000, scoped, tag = 'input window, operand 0']
    #allocation3 [shape = 's32[2]{0}', space=sflag, size = 0x8, scoped, tag = 'scoped memory for tpu_custom_call.1']
    #allocation4 [shape = 's32[2]{0}', space=sflag, size = 0x8, scoped, tag = 'scoped memory for tpu_custom_call.1']
    #allocation5 [shape = 'u8[28672]{0}', space=vmem, size = 0x7000, scoped, tag = 'input window, operand 1, single buffered']
    #allocation6 [shape = 's32[1]{0}', space=sflag, size = 0x4, scoped, tag = 'scoped memory for tpu_custom_call.1']
    #allocation7 [shape = 'u8[512]{0}', space=vmem, size = 0x400, scoped, tag = 'input window, operand 2, single buffered']
    #allocation8 [shape = 'u8[4096]{0}', space=vmem, size = 0x1000, scoped, tag = 'input window, operand 3, single buffered']
    #allocation9 [shape = 's32[1]{0}', space=sflag, size = 0x4, scoped, tag = 'scoped memory for tpu_custom_call.1']
    #allocation10 [shape = 'u8[512]{0}', space=vmem, size = 0x400, scoped, tag = 'input window, operand 4, single buffered']
    #allocation11 [shape = 'u8[16384]{0}', space=vmem, size = 0x4000, scoped, tag = 'input window, operand 5, single buffered']
    #allocation12 [shape = 's32[1]{0}', space=sflag, size = 0x4, scoped, tag = 'scoped memory for tpu_custom_call.1']
    #allocation13 [shape = 'u8[512]{0}', space=vmem, size = 0x400, scoped, tag = 'input window, operand 6, single buffered']
    #allocation14 [shape = 'u8[65536]{0}', space=vmem, size = 0x10000, scoped, tag = 'output window, operand 0']
    %12 = vsyncpa [#allocation3], 0
    %s13 = scalar_lea.sflag [#allocation3], 1
    %14 = vsyncpa %s13, 0
    %15 = vsyncpa [#allocation6], 0
    %16 = vsyncpa [#allocation9], 0
    %17 = vsyncpa [#allocation12], 0
    %18 = vsyncpa [#allocation4], 0
    %s19 = scalar_lea.sflag [#allocation4], 1
    %20 = vsyncpa %s19, 0
    loop: start=0, step=1, limit=4
    $region2: #{tpu_custom_call.1} parent=1 // loop_pre_header
      _
    $region3: #{tpu_custom_call.1} parent=1 // loop_header
      %s22 = sphi 0, %s26
      %p23 = scmp.ge.s32.totalorder %s22, 4
      %s29 = sphi 0, %s41
      %s30 = sphi 0, %s37
      %s31 = sphi 0, %s29
      %s32 = sphi 0, %s30
      %s33 = sphi 0, %s31
      %s34 = sphi 0, %s32
      %s44 = sphi 0, %s46
      %s47 = sphi 0, %s44
      %s48 = sphi 0, %s47
      %s64 = sphi 0, %s48
      %s68 = sphi 0, %s68
      %s70 = sphi 0, %s68
      %s71 = sphi 0, %s70
      %s85 = sphi 0, %s71
      %s89 = sphi 0, %s89
      %s91 = sphi 0, %s89
      %s92 = sphi 0, %s91
      %s106 = sphi 0, %s92
      %s110 = sphi 0, %s110
      %s112 = sphi 0, %s110
      %s113 = sphi 0, %s112
      %s127 = sphi 0, %s113
      %s131 = sphi 0, %s131
      %s133 = sphi 0, %s131
      %s134 = sphi 0, %s133
      %s148 = sphi 0, %s134
      %s152 = sphi 0, %s152
      %s154 = sphi 0, %s152
      %s155 = sphi 0, %s154
      %s169 = sphi 0, %s155
      %s173 = sphi 0, %s173
      %s175 = sphi 0, %s173
      %s176 = sphi 0, %s175
      %s190 = sphi 0, %s176
      %s198 = sphi 0, %s200
      %s201 = sphi 0, %s198
      %s202 = sphi 0, %s201
      %s218 = sphi 0, %s202
    $region4: #{tpu_custom_call.1} parent=1 // loop_header_branch
      %25 = sbr.rel (%p23) target = $region8
    $region5: #{tpu_custom_call.1} parent=1 // loop_body
      %s27 = ssub.s32 %s22, 1
      %s28 = ssub.s32 %s22, 2
      %s35 = sadd.s32 1, %s30
      %p36 = scmp.ge.s32.totalorder %s35, 1
      %s37 = scalar_select %p36, 0, %s35
      %s38 = sadd.s32 1, %s29
      %s39 = scalar_select %p36, %s38, %s29
      %p40 = scmp.ge.s32.totalorder %s39, 2
      %s41 = scalar_select %p40, 0, %s39
      %s42 = ssub.s32 %s29, %s41
      %p43 = scmp.eq.s32.totalorder %s42, 0
      %s45 = sadd.s32 %s44, 1
      %s46 = scalar_select %p43, %s44, %s45
      %p49 = pneg %p43
      %p50 = scmp.eq.s32.totalorder %s22, 1
      %p51 = por %p49, %p50
      %p52 = scmp.ne.s32.totalorder %s44, %s47
      %p53 = scmp.eq.s32.totalorder %s22, 0
      %p54 = por %p52, %p53
      %p55 = scmp.ne.s32.totalorder %s44, %s47
      %p56 = scmp.eq.s32.totalorder %s27, 1
      %p57 = por %p55, %p56
      %p58 = scmp.ne.s32.totalorder %s47, %s48
      %p59 = scmp.eq.s32.totalorder %s27, 0
      %p60 = por %p58, %p59
      %p61 = scmp.ne.s32.totalorder %s47, %s48
      %p62 = scmp.eq.s32.totalorder %s28, 1
      %p63 = por %p61, %p62
      %p65 = scmp.ne.s32.totalorder %s48, %s64
      %p66 = scmp.eq.s32.totalorder %s28, 0
      %p67 = por %p65, %p66
      %s69 = sadd.s32 %s68, 1
      %p72 = scmp.eq.s32.totalorder %s22, 1
      %p73 = scmp.ne.s32.totalorder %s68, %s70
      %p74 = scmp.eq.s32.totalorder %s22, 0
      %p75 = por %p73, %p74
      %p76 = scmp.ne.s32.totalorder %s68, %s70
      %p77 = scmp.eq.s32.totalorder %s27, 1
      %p78 = por %p76, %p77
      %p79 = scmp.ne.s32.totalorder %s70, %s71
      %p80 = scmp.eq.s32.totalorder %s27, 0
      %p81 = por %p79, %p80
      %p82 = scmp.ne.s32.totalorder %s70, %s71
      %p83 = scmp.eq.s32.totalorder %s28, 1
      %p84 = por %p82, %p83
      %p86 = scmp.ne.s32.totalorder %s71, %s85
      %p87 = scmp.eq.s32.totalorder %s28, 0
      %p88 = por %p86, %p87
      %s90 = sadd.s32 %s89, 1
      %p93 = scmp.eq.s32.totalorder %s22, 1
      %p94 = scmp.ne.s32.totalorder %s89, %s91
      %p95 = scmp.eq.s32.totalorder %s22, 0
      %p96 = por %p94, %p95
      %p97 = scmp.ne.s32.totalorder %s89, %s91
      %p98 = scmp.eq.s32.totalorder %s27, 1
      %p99 = por %p97, %p98
      %p100 = scmp.ne.s32.totalorder %s91, %s92
      %p101 = scmp.eq.s32.totalorder %s27, 0
      %p102 = por %p100, %p101
      %p103 = scmp.ne.s32.totalorder %s91, %s92
      %p104 = scmp.eq.s32.totalorder %s28, 1
      %p105 = por %p103, %p104
      %p107 = scmp.ne.s32.totalorder %s92, %s106
      %p108 = scmp.eq.s32.totalorder %s28, 0
      %p109 = por %p107, %p108
      %s111 = sadd.s32 %s110, 1
      %p114 = scmp.eq.s32.totalorder %s22, 1
      %p115 = scmp.ne.s32.totalorder %s110, %s112
      %p116 = scmp.eq.s32.totalorder %s22, 0
      %p117 = por %p115, %p116
      %p118 = scmp.ne.s32.totalorder %s110, %s112
      %p119 = scmp.eq.s32.totalorder %s27, 1
      %p120 = por %p118, %p119
      %p121 = scmp.ne.s32.totalorder %s112, %s113
      %p122 = scmp.eq.s32.totalorder %s27, 0
      %p123 = por %p121, %p122
      %p124 = scmp.ne.s32.totalorder %s112, %s113
      %p125 = scmp.eq.s32.totalorder %s28, 1
      %p126 = por %p124, %p125
      %p128 = scmp.ne.s32.totalorder %s113, %s127
      %p129 = scmp.eq.s32.totalorder %s28, 0
      %p130 = por %p128, %p129
      %s132 = sadd.s32 %s131, 1
      %p135 = scmp.eq.s32.totalorder %s22, 1
      %p136 = scmp.ne.s32.totalorder %s131, %s133
      %p137 = scmp.eq.s32.totalorder %s22, 0
      %p138 = por %p136, %p137
      %p139 = scmp.ne.s32.totalorder %s131, %s133
      %p140 = scmp.eq.s32.totalorder %s27, 1
      %p141 = por %p139, %p140
      %p142 = scmp.ne.s32.totalorder %s133, %s134
      %p143 = scmp.eq.s32.totalorder %s27, 0
      %p144 = por %p142, %p143
      %p145 = scmp.ne.s32.totalorder %s133, %s134
      %p146 = scmp.eq.s32.totalorder %s28, 1
      %p147 = por %p145, %p146
      %p149 = scmp.ne.s32.totalorder %s134, %s148
      %p150 = scmp.eq.s32.totalorder %s28, 0
      %p151 = por %p149, %p150
      %s153 = sadd.s32 %s152, 1
      %p156 = scmp.eq.s32.totalorder %s22, 1
      %p157 = scmp.ne.s32.totalorder %s152, %s154
      %p158 = scmp.eq.s32.totalorder %s22, 0
      %p159 = por %p157, %p158
      %p160 = scmp.ne.s32.totalorder %s152, %s154
      %p161 = scmp.eq.s32.totalorder %s27, 1
      %p162 = por %p160, %p161
      %p163 = scmp.ne.s32.totalorder %s154, %s155
      %p164 = scmp.eq.s32.totalorder %s27, 0
      %p165 = por %p163, %p164
      %p166 = scmp.ne.s32.totalorder %s154, %s155
      %p167 = scmp.eq.s32.totalorder %s28, 1
      %p168 = por %p166, %p167
      %p170 = scmp.ne.s32.totalorder %s155, %s169
      %p171 = scmp.eq.s32.totalorder %s28, 0
      %p172 = por %p170, %p171
      %s174 = sadd.s32 %s173, 1
      %p177 = scmp.eq.s32.totalorder %s22, 1
      %p178 = scmp.ne.s32.totalorder %s173, %s175
      %p179 = scmp.eq.s32.totalorder %s22, 0
      %p180 = por %p178, %p179
      %p181 = scmp.ne.s32.totalorder %s173, %s175
      %p182 = scmp.eq.s32.totalorder %s27, 1
      %p183 = por %p181, %p182
      %p184 = scmp.ne.s32.totalorder %s175, %s176
      %p185 = scmp.eq.s32.totalorder %s27, 0
      %p186 = por %p184, %p185
      %p187 = scmp.ne.s32.totalorder %s175, %s176
      %p188 = scmp.eq.s32.totalorder %s28, 1
      %p189 = por %p187, %p188
      %p191 = scmp.ne.s32.totalorder %s176, %s190
      %p192 = scmp.eq.s32.totalorder %s28, 0
      %p193 = por %p191, %p192
      %s194 = ssub.s32 %s29, %s41
      %s195 = ssub.s32 %s30, %s37
      %s196 = sor.u32 %s194, %s195
      %p197 = scmp.eq.s32.totalorder %s196, 0
      %s199 = sadd.s32 %s198, 1
      %s200 = scalar_select %p197, %s198, %s199
      %p203 = pneg %p197
      %p204 = scmp.eq.s32.totalorder %s22, 1
      %p205 = por %p203, %p204
      %p206 = scmp.ne.s32.totalorder %s198, %s201
      %p207 = scmp.eq.s32.totalorder %s22, 0
      %p208 = por %p206, %p207
      %p209 = scmp.ne.s32.totalorder %s198, %s201
      %p210 = scmp.eq.s32.totalorder %s27, 1
      %p211 = por %p209, %p210
      %p212 = scmp.ne.s32.totalorder %s201, %s202
      %p213 = scmp.eq.s32.totalorder %s27, 0
      %p214 = por %p212, %p213
      %p215 = scmp.ne.s32.totalorder %s201, %s202
      %p216 = scmp.eq.s32.totalorder %s28, 1
      %p217 = por %p215, %p216
      %p219 = scmp.ne.s32.totalorder %s202, %s218
      %p220 = scmp.eq.s32.totalorder %s28, 0
      %p221 = por %p219, %p220
      %p222 = scmp.le.s32.totalorder 1, %s22
      %p223 = scmp.lt.s32.totalorder %s22, 3
      %p224 = pnand %p222, %p223
      %p225 = pneg %p224
      // Predicated region
      $region9: #{tpu_custom_call.1} parent=5 // pred_check
        _
      $region10: #{tpu_custom_call.1} parent=5 // pred_check_branch
        %227 = sbr.rel (%p224) target = $region12
      $region11: #{tpu_custom_call.1} parent=5 // pred_region
        %s228 = ssub.s32 %s22, 1
        // Predicated region
        $region13: #{tpu_custom_call.1} parent=11 // pred_check
          %p229 = pneg %p81
        $region14: #{tpu_custom_call.1} parent=11 // pred_check_branch
          %231 = sbr.rel (%p229) target = $region16
        $region15: #{tpu_custom_call.1} parent=11 // pred_region
          %s233 = ssub.s32 896, 896
          %234 = vsyncadd [#allocation6], %s233
          %s235 = sshll.u32 [#allocation5], 4
          %s236 = int_to_ptr.vmem [resolvable:$true] %s235
          %241 = dma.hbm_to_vmem [thread:$0]  %s1, 896, %s236, [#allocation6], 128, 128, 8
        $region16: #{tpu_custom_call.1} parent=11 // pred_fallthru
          _
        // Predicated region
        $region17: #{tpu_custom_call.1} parent=11 // pred_check
          %p242 = pneg %p102
        $region18: #{tpu_custom_call.1} parent=11 // pred_check_branch
          %244 = sbr.rel (%p242) target = $region20
        $region19: #{tpu_custom_call.1} parent=11 // pred_region
          %s246 = ssub.s32 16, 16
          %247 = vsyncadd [#allocation6], %s246
          %s249 = sshll.u32 [#allocation7], 4
          %s250 = int_to_ptr.vmem [resolvable:$true] %s249
          %252 = dma.hbm_to_vmem [thread:$0]  %s2, 16, %s250, [#allocation6]
        $region20: #{tpu_custom_call.1} parent=11 // pred_fallthru
          _
        // Predicated region
        $region21: #{tpu_custom_call.1} parent=11 // pred_check
          %p253 = pneg %p123
        $region22: #{tpu_custom_call.1} parent=11 // pred_check_branch
          %255 = sbr.rel (%p253) target = $region24
        $region23: #{tpu_custom_call.1} parent=11 // pred_region
          %s257 = ssub.s32 128, 128
          %258 = vsyncadd [#allocation9], %s257
          %s259 = sshll.u32 [#allocation8], 4
          %s260 = int_to_ptr.vmem [resolvable:$true] %s259
          %265 = dma.hbm_to_vmem [thread:$0]  %s3, 128, %s260, [#allocation9], 64, 64, 4
        $region24: #{tpu_custom_call.1} parent=11 // pred_fallthru
          _
        // Predicated region
        $region25: #{tpu_custom_call.1} parent=11 // pred_check
          %p266 = pneg %p144
        $region26: #{tpu_custom_call.1} parent=11 // pred_check_branch
          %268 = sbr.rel (%p266) target = $region28
        $region27: #{tpu_custom_call.1} parent=11 // pred_region
          %s270 = ssub.s32 16, 16
          %271 = vsyncadd [#allocation9], %s270
          %s273 = sshll.u32 [#allocation10], 4
          %s274 = int_to_ptr.vmem [resolvable:$true] %s273
          %276 = dma.hbm_to_vmem [thread:$0]  %s4, 16, %s274, [#allocation9]
        $region28: #{tpu_custom_call.1} parent=11 // pred_fallthru
          _
        // Predicated region
        $region29: #{tpu_custom_call.1} parent=11 // pred_check
          %p277 = pneg %p165
        $region30: #{tpu_custom_call.1} parent=11 // pred_check_branch
          %279 = sbr.rel (%p277) target = $region32
        $region31: #{tpu_custom_call.1} parent=11 // pred_region
          %s281 = ssub.s32 512, 512
          %282 = vsyncadd [#allocation12], %s281
          %s283 = sshll.u32 [#allocation11], 4
          %s284 = int_to_ptr.vmem [resolvable:$true] %s283
          %289 = dma.hbm_to_vmem [thread:$0]  %s5, 512, %s284, [#allocation12], 64, 64, 4
        $region32: #{tpu_custom_call.1} parent=11 // pred_fallthru
          _
        // Predicated region
        $region33: #{tpu_custom_call.1} parent=11 // pred_check
          %p290 = pneg %p186
        $region34: #{tpu_custom_call.1} parent=11 // pred_check_branch
          %292 = sbr.rel (%p290) target = $region36
        $region35: #{tpu_custom_call.1} parent=11 // pred_region
          %s294 = ssub.s32 16, 16
          %295 = vsyncadd [#allocation12], %s294
          %s297 = sshll.u32 [#allocation13], 4
          %s298 = int_to_ptr.vmem [resolvable:$true] %s297
          %300 = dma.hbm_to_vmem [thread:$0]  %s6, 16, %s298, [#allocation12]
        $region36: #{tpu_custom_call.1} parent=11 // pred_fallthru
          _
      $region12: #{tpu_custom_call.1} parent=5 // pred_fallthru
        _
      %p301 = scmp.lt.s32.totalorder %s22, 2
      // Predicated region
      $region37: #{tpu_custom_call.1} parent=5 // pred_check
        %p302 = pneg %p301
      $region38: #{tpu_custom_call.1} parent=5 // pred_check_branch
        %304 = sbr.rel (%p302) target = $region40
      $region39: #{tpu_custom_call.1} parent=5 // pred_region
        // Predicated region
        $region41: #{tpu_custom_call.1} parent=39 // pred_check
          %p305 = pneg %p54
        $region42: #{tpu_custom_call.1} parent=39 // pred_check_branch
          %307 = sbr.rel (%p305) target = $region44
        $region43: #{tpu_custom_call.1} parent=39 // pred_region
          %s308 = sand.u32 %s44, 1
          %s309 = scalar_lea.sflag [#allocation3], %s308
          %s310 = sand.u32 %s44, 1
          %s311 = smul.addr %s310, 224
          %s312 = scalar_lea.vmem [#allocation2], %s311
          %s314 = ssub.s32 3584, 3584
          %315 = vsyncadd %s309, %s314
          %s316 = smul.addr %s29, 28
          %s317 = smul.addr %s316, 128
          %s318 = scalar_lea.hbm %s0, %s317
          %s319 = sshll.u32 %s312, 4
          %s320 = int_to_ptr.vmem [resolvable:$true] %s319
          %325 = dma.hbm_to_vmem [thread:$0]  %s318, 3584, %s320, %s309, 128, 128, 8
        $region44: #{tpu_custom_call.1} parent=39 // pred_fallthru
          _
      $region40: #{tpu_custom_call.1} parent=5 // pred_fallthru
        _
      %p326 = scmp.le.s32.totalorder 1, %s22
      %p327 = scmp.lt.s32.totalorder %s22, 3
      %p328 = pnand %p326, %p327
      %p329 = pneg %p328
      // Predicated region
      $region45: #{tpu_custom_call.1} parent=5 // pred_check
        _
      $region46: #{tpu_custom_call.1} parent=5 // pred_check_branch
        %331 = sbr.rel (%p328) target = $region48
      $region47: #{tpu_custom_call.1} parent=5 // pred_region
        %s332 = ssub.s32 %s22, 1
        %s333 = sand.u32 %s47, 1
        %s334 = scalar_lea.sflag [#allocation3], %s333
        %s335 = sand.u32 %s47, 1
        %s336 = smul.addr %s335, 224
        %s337 = scalar_lea.vmem [#allocation2], %s336
        // Predicated region
        $region49: #{tpu_custom_call.1} parent=47 // pred_check
          %p338 = pneg %p60
        $region50: #{tpu_custom_call.1} parent=47 // pred_check_branch
          %340 = sbr.rel (%p338) target = $region52
        $region51: #{tpu_custom_call.1} parent=47 // pred_region
          %341 = dma.done %s334, 3584
        $region52: #{tpu_custom_call.1} parent=47 // pred_fallthru
          _
        // Predicated region
        $region53: #{tpu_custom_call.1} parent=47 // pred_check
          %p342 = pneg %p81
        $region54: #{tpu_custom_call.1} parent=47 // pred_check_branch
          %344 = sbr.rel (%p342) target = $region56
        $region55: #{tpu_custom_call.1} parent=47 // pred_region
          %345 = dma.done [#allocation6], 896
        $region56: #{tpu_custom_call.1} parent=47 // pred_fallthru
          _
        // Predicated region
        $region57: #{tpu_custom_call.1} parent=47 // pred_check
          %p346 = pneg %p102
        $region58: #{tpu_custom_call.1} parent=47 // pred_check_branch
          %348 = sbr.rel (%p346) target = $region60
        $region59: #{tpu_custom_call.1} parent=47 // pred_region
          %349 = dma.done [#allocation6], 16
        $region60: #{tpu_custom_call.1} parent=47 // pred_fallthru
          _
        // Predicated region
        $region61: #{tpu_custom_call.1} parent=47 // pred_check
          %p350 = pneg %p123
        $region62: #{tpu_custom_call.1} parent=47 // pred_check_branch
          %352 = sbr.rel (%p350) target = $region64
        $region63: #{tpu_custom_call.1} parent=47 // pred_region
          %353 = dma.done [#allocation9], 128
        $region64: #{tpu_custom_call.1} parent=47 // pred_fallthru
          _
        // Predicated region
        $region65: #{tpu_custom_call.1} parent=47 // pred_check
          %p354 = pneg %p144
        $region66: #{tpu_custom_call.1} parent=47 // pred_check_branch
          %356 = sbr.rel (%p354) target = $region68
        $region67: #{tpu_custom_call.1} parent=47 // pred_region
          %357 = dma.done [#allocation9], 16
        $region68: #{tpu_custom_call.1} parent=47 // pred_fallthru
          _
        // Predicated region
        $region69: #{tpu_custom_call.1} parent=47 // pred_check
          %p358 = pneg %p165
        $region70: #{tpu_custom_call.1} parent=47 // pred_check_branch
          %360 = sbr.rel (%p358) target = $region72
        $region71: #{tpu_custom_call.1} parent=47 // pred_region
          %361 = dma.done [#allocation12], 512
        $region72: #{tpu_custom_call.1} parent=47 // pred_fallthru
          _
        // Predicated region
        $region73: #{tpu_custom_call.1} parent=47 // pred_check
          %p362 = pneg %p186
        $region74: #{tpu_custom_call.1} parent=47 // pred_check_branch
          %364 = sbr.rel (%p362) target = $region76
        $region75: #{tpu_custom_call.1} parent=47 // pred_region
          %365 = dma.done [#allocation12], 16
        $region76: #{tpu_custom_call.1} parent=47 // pred_fallthru
          _
        %s366 = sand.u32 %s47, 1
        %s367 = scalar_lea.sflag [#allocation3], %s366
        %s368 = sand.u32 %s47, 1
        %s369 = smul.addr %s368, 224
        %s370 = scalar_lea.vmem [#allocation2], %s369
        %p371 = pneg %p60
        %p372 = pneg %p57
        %p373 = pneg %p81
        %p374 = pneg %p78
        %p375 = pneg %p102
        %p376 = pneg %p99
        %p377 = pneg %p123
        %p378 = pneg %p120
        %p379 = pneg %p144
        %p380 = pneg %p141
        %p381 = pneg %p165
        %p382 = pneg %p162
        %p383 = pneg %p186
        %p384 = pneg %p183
        %p385 = pneg %p214
        %p386 = pneg %p211
        %s387 = sand.u32 %s201, 1
        %s388 = scalar_lea.sflag [#allocation4], %s387
        %s389 = sand.u32 %s201, 1
        %s390 = smul.addr %s389, 64
        %s391 = scalar_lea.vmem [#allocation14], %s390
        %s392 = smul.u32 8, %s32
        %s394 = smul.u32 %s32, 8
        %v395 = vld [vmem:[#allocation5] sm:$0x7f]
        %v396 = vld [vmem:[#allocation5 + $0x8] sm:$0x7f]
        %v397 = vld [vmem:[#allocation5 + $0x10] sm:$0x7f]
        %v398 = vld [vmem:[#allocation5 + $0x18] sm:$0x7f]
        %v399 = vld [vmem:[#allocation5 + $0x20] sm:$0x7f]
        %v400 = vld [vmem:[#allocation5 + $0x28] sm:$0x7f]
        %v401 = vld [vmem:[#allocation5 + $0x30] sm:$0x7f]
        %s402 = smul.u32 %s394, 16
        %s403 = scalar_lea.vmem %s337, %s402 [#allocation2]
        %v404 = vld [vmem:[%s403] sm:$0xff]
        %v405 = vld [vmem:[%s403 + $0x10] sm:$0xff]
        %v406 = vld [vmem:[%s403 + $0x20] sm:$0xff]
        %v407 = vld [vmem:[%s403 + $0x30] sm:$0xff]
        %v408 = vld [vmem:[%s403 + $0x40] sm:$0xff]
        %v409 = vld [vmem:[%s403 + $0x50] sm:$0xff]
        %v410 = vld [vmem:[%s403 + $0x60] sm:$0xff]
        %v411 = vld [vmem:[%s403 + $0x70] sm:$0xff]
        %v412 = vld [vmem:[%s403 + $0x80] sm:$0xff]
        %v413 = vld [vmem:[%s403 + $0x90] sm:$0xff]
        %v414 = vld [vmem:[%s403 + $0xa0] sm:$0xff]
        %v415 = vld [vmem:[%s403 + $0xb0] sm:$0xff]
        %v416 = vld [vmem:[%s403 + $0xc0] sm:$0xff]
        %v417 = vld [vmem:[%s403 + $0xd0] sm:$0xff]
        %v418 = vlaneseq
        %v419 = vshrl.u32 %v418, 7
        %v420 = vsub.s32 0, %v419
        %v421 = vrot.slane %v395, %v420
        %v422 = vmul.f32 %v404, %v421
        %v423 = vmul.f32 %v405, %v421
        %v424 = vmul.f32 %v406, %v421
        %v425 = vmul.f32 %v407, %v421
        %v426 = vmul.f32 %v408, %v421
        %v427 = vmul.f32 %v409, %v421
        %v428 = vmul.f32 %v410, %v421
        %v429 = vmul.f32 %v411, %v421
        %v430 = vlaneseq
        %v431 = vshrl.u32 %v430, 7
        %v432 = vsub.s32 1, %v431
        %v433 = vrot.slane %v395, %v432
        %v434 = vmul.f32 %v405, %v433
        %v435 = vmul.f32 %v406, %v433
        %v436 = vmul.f32 %v407, %v433
        %v437 = vmul.f32 %v408, %v433
        %v438 = vmul.f32 %v409, %v433
        %v439 = vmul.f32 %v410, %v433
        %v440 = vmul.f32 %v411, %v433
        %v441 = vmul.f32 %v412, %v433
        %v442 = vlaneseq
        %v443 = vshrl.u32 %v442, 7
        %v444 = vsub.s32 2, %v443
        %v445 = vrot.slane %v395, %v444
        %v446 = vmul.f32 %v406, %v445
        %v447 = vmul.f32 %v407, %v445
        %v448 = vmul.f32 %v408, %v445
        %v449 = vmul.f32 %v409, %v445
        %v450 = vmul.f32 %v410, %v445
        %v451 = vmul.f32 %v411, %v445
        %v452 = vmul.f32 %v412, %v445
        %v453 = vmul.f32 %v413, %v445
        %v454 = vadd.f32 %v422, %v446
        %v455 = vadd.f32 %v423, %v447
        %v456 = vadd.f32 %v424, %v448
        %v457 = vadd.f32 %v425, %v449
        %v458 = vadd.f32 %v426, %v450
        %v459 = vadd.f32 %v427, %v451
        %v460 = vadd.f32 %v428, %v452
        %v461 = vadd.f32 %v429, %v453
        %v462 = vlaneseq
        %v463 = vshrl.u32 %v462, 7
        %v464 = vsub.s32 3, %v463
        %v465 = vrot.slane %v395, %v464
        %v466 = vmul.f32 %v407, %v465
        %v467 = vmul.f32 %v408, %v465
        %v468 = vmul.f32 %v409, %v465
        %v469 = vmul.f32 %v410, %v465
        %v470 = vmul.f32 %v411, %v465
        %v471 = vmul.f32 %v412, %v465
        %v472 = vmul.f32 %v413, %v465
        %v473 = vmul.f32 %v414, %v465
        %v474 = vadd.f32 %v434, %v466
        %v475 = vadd.f32 %v435, %v467
        %v476 = vadd.f32 %v436, %v468
        %v477 = vadd.f32 %v437, %v469
        %v478 = vadd.f32 %v438, %v470
        %v479 = vadd.f32 %v439, %v471
        %v480 = vadd.f32 %v440, %v472
        %v481 = vadd.f32 %v441, %v473
        %v482 = vlaneseq
        %v483 = vshrl.u32 %v482, 7
        %v484 = vsub.s32 4, %v483
        %v485 = vrot.slane %v395, %v484
        %v486 = vmul.f32 %v408, %v485
        %v487 = vmul.f32 %v409, %v485
        %v488 = vmul.f32 %v410, %v485
        %v489 = vmul.f32 %v411, %v485
        %v490 = vmul.f32 %v412, %v485
        %v491 = vmul.f32 %v413, %v485
        %v492 = vmul.f32 %v414, %v485
        %v493 = vmul.f32 %v415, %v485
        %v494 = vadd.f32 %v454, %v486
        %v495 = vadd.f32 %v455, %v487
        %v496 = vadd.f32 %v456, %v488
        %v497 = vadd.f32 %v457, %v489
        %v498 = vadd.f32 %v458, %v490
        %v499 = vadd.f32 %v459, %v491
        %v500 = vadd.f32 %v460, %v492
        %v501 = vadd.f32 %v461, %v493
        %v502 = vlaneseq
        %v503 = vshrl.u32 %v502, 7
        %v504 = vsub.s32 5, %v503
        %v505 = vrot.slane %v395, %v504
        %v506 = vmul.f32 %v409, %v505
        %v507 = vmul.f32 %v410, %v505
        %v508 = vmul.f32 %v411, %v505
        %v509 = vmul.f32 %v412, %v505
        %v510 = vmul.f32 %v413, %v505
        %v511 = vmul.f32 %v414, %v505
        %v512 = vmul.f32 %v415, %v505
        %v513 = vmul.f32 %v416, %v505
        %v514 = vadd.f32 %v474, %v506
        %v515 = vadd.f32 %v475, %v507
        %v516 = vadd.f32 %v476, %v508
        %v517 = vadd.f32 %v477, %v509
        %v518 = vadd.f32 %v478, %v510
        %v519 = vadd.f32 %v479, %v511
        %v520 = vadd.f32 %v480, %v512
        %v521 = vadd.f32 %v481, %v513
        %v522 = vlaneseq
        %v523 = vshrl.u32 %v522, 7
        %v524 = vsub.s32 6, %v523
        %v525 = vrot.slane %v395, %v524
        %v526 = vmul.f32 %v410, %v525
        %v527 = vmul.f32 %v411, %v525
        %v528 = vmul.f32 %v412, %v525
        %v529 = vmul.f32 %v413, %v525
        %v530 = vmul.f32 %v414, %v525
        %v531 = vmul.f32 %v415, %v525
        %v532 = vmul.f32 %v416, %v525
        %v533 = vmul.f32 %v417, %v525
        %v534 = vadd.f32 %v494, %v526
        %v535 = vadd.f32 %v495, %v527
        %v536 = vadd.f32 %v496, %v528
        %v537 = vadd.f32 %v497, %v529
        %v538 = vadd.f32 %v498, %v530
        %v539 = vadd.f32 %v499, %v531
        %v540 = vadd.f32 %v500, %v532
        %v541 = vadd.f32 %v501, %v533
        %v542 = vld [vmem:[%s403 + $0x1] sm:$0xff]
        %v543 = vld [vmem:[%s403 + $0x11] sm:$0xff]
        %v544 = vld [vmem:[%s403 + $0x21] sm:$0xff]
        %v545 = vld [vmem:[%s403 + $0x31] sm:$0xff]
        %v546 = vld [vmem:[%s403 + $0x41] sm:$0xff]
        %v547 = vld [vmem:[%s403 + $0x51] sm:$0xff]
        %v548 = vld [vmem:[%s403 + $0x61] sm:$0xff]
        %v549 = vld [vmem:[%s403 + $0x71] sm:$0xff]
        %v550 = vld [vmem:[%s403 + $0x81] sm:$0xff]
        %v551 = vld [vmem:[%s403 + $0x91] sm:$0xff]
        %v552 = vld [vmem:[%s403 + $0xa1] sm:$0xff]
        %v553 = vld [vmem:[%s403 + $0xb1] sm:$0xff]
        %v554 = vld [vmem:[%s403 + $0xc1] sm:$0xff]
        %v555 = vld [vmem:[%s403 + $0xd1] sm:$0xff]
        %v556 = vlaneseq
        %v557 = vshrl.u32 %v556, 7
        %v558 = vsub.s32 0, %v557
        %v559 = vrot.slane %v396, %v558
        %v560 = vmul.f32 %v542, %v559
        %v561 = vmul.f32 %v543, %v559
        %v562 = vmul.f32 %v544, %v559
        %v563 = vmul.f32 %v545, %v559
        %v564 = vmul.f32 %v546, %v559
        %v565 = vmul.f32 %v547, %v559
        %v566 = vmul.f32 %v548, %v559
        %v567 = vmul.f32 %v549, %v559
        %v568 = vadd.f32 %v534, %v560
        %v569 = vadd.f32 %v535, %v561
        %v570 = vadd.f32 %v536, %v562
        %v571 = vadd.f32 %v537, %v563
        %v572 = vadd.f32 %v538, %v564
        %v573 = vadd.f32 %v539, %v565
        %v574 = vadd.f32 %v540, %v566
        %v575 = vadd.f32 %v541, %v567
        %v576 = vlaneseq
        %v577 = vshrl.u32 %v576, 7
        %v578 = vsub.s32 1, %v577
        %v579 = vrot.slane %v396, %v578
        %v580 = vmul.f32 %v543, %v579
        %v581 = vmul.f32 %v544, %v579
        %v582 = vmul.f32 %v545, %v579
        %v583 = vmul.f32 %v546, %v579
        %v584 = vmul.f32 %v547, %v579
        %v585 = vmul.f32 %v548, %v579
        %v586 = vmul.f32 %v549, %v579
        %v587 = vmul.f32 %v550, %v579
        %v588 = vadd.f32 %v514, %v580
        %v589 = vadd.f32 %v515, %v581
        %v590 = vadd.f32 %v516, %v582
        %v591 = vadd.f32 %v517, %v583
        %v592 = vadd.f32 %v518, %v584
        %v593 = vadd.f32 %v519, %v585
        %v594 = vadd.f32 %v520, %v586
        %v595 = vadd.f32 %v521, %v587
        %v596 = vlaneseq
        %v597 = vshrl.u32 %v596, 7
        %v598 = vsub.s32 2, %v597
        %v599 = vrot.slane %v396, %v598
        %v600 = vmul.f32 %v544, %v599
        %v601 = vmul.f32 %v545, %v599
        %v602 = vmul.f32 %v546, %v599
        %v603 = vmul.f32 %v547, %v599
        %v604 = vmul.f32 %v548, %v599
        %v605 = vmul.f32 %v549, %v599
        %v606 = vmul.f32 %v550, %v599
        %v607 = vmul.f32 %v551, %v599
        %v608 = vadd.f32 %v568, %v600
        %v609 = vadd.f32 %v569, %v601
        %v610 = vadd.f32 %v570, %v602
        %v611 = vadd.f32 %v571, %v603
        %v612 = vadd.f32 %v572, %v604
        %v613 = vadd.f32 %v573, %v605
        %v614 = vadd.f32 %v574, %v606
        %v615 = vadd.f32 %v575, %v607
        %v616 = vlaneseq
        %v617 = vshrl.u32 %v616, 7
        %v618 = vsub.s32 3, %v617
        %v619 = vrot.slane %v396, %v618
        %v620 = vmul.f32 %v545, %v619
        %v621 = vmul.f32 %v546, %v619
        %v622 = vmul.f32 %v547, %v619
        %v623 = vmul.f32 %v548, %v619
        %v624 = vmul.f32 %v549, %v619
        %v625 = vmul.f32 %v550, %v619
        %v626 = vmul.f32 %v551, %v619
        %v627 = vmul.f32 %v552, %v619
        %v628 = vadd.f32 %v588, %v620
        %v629 = vadd.f32 %v589, %v621
        %v630 = vadd.f32 %v590, %v622
        %v631 = vadd.f32 %v591, %v623
        %v632 = vadd.f32 %v592, %v624
        %v633 = vadd.f32 %v593, %v625
        %v634 = vadd.f32 %v594, %v626
        %v635 = vadd.f32 %v595, %v627
        %v636 = vlaneseq
        %v637 = vshrl.u32 %v636, 7
        %v638 = vsub.s32 4, %v637
        %v639 = vrot.slane %v396, %v638
        %v640 = vmul.f32 %v546, %v639
        %v641 = vmul.f32 %v547, %v639
        %v642 = vmul.f32 %v548, %v639
        %v643 = vmul.f32 %v549, %v639
        %v644 = vmul.f32 %v550, %v639
        %v645 = vmul.f32 %v551, %v639
        %v646 = vmul.f32 %v552, %v639
        %v647 = vmul.f32 %v553, %v639
        %v648 = vadd.f32 %v608, %v640
        %v649 = vadd.f32 %v609, %v641
        %v650 = vadd.f32 %v610, %v642
        %v651 = vadd.f32 %v611, %v643
        %v652 = vadd.f32 %v612, %v644
        %v653 = vadd.f32 %v613, %v645
        %v654 = vadd.f32 %v614, %v646
        %v655 = vadd.f32 %v615, %v647
        %v656 = vlaneseq
        %v657 = vshrl.u32 %v656, 7
        %v658 = vsub.s32 5, %v657
        %v659 = vrot.slane %v396, %v658
        %v660 = vmul.f32 %v547, %v659
        %v661 = vmul.f32 %v548, %v659
        %v662 = vmul.f32 %v549, %v659
        %v663 = vmul.f32 %v550, %v659
        %v664 = vmul.f32 %v551, %v659
        %v665 = vmul.f32 %v552, %v659
        %v666 = vmul.f32 %v553, %v659
        %v667 = vmul.f32 %v554, %v659
        %v668 = vadd.f32 %v628, %v660
        %v669 = vadd.f32 %v629, %v661
        %v670 = vadd.f32 %v630, %v662
        %v671 = vadd.f32 %v631, %v663
        %v672 = vadd.f32 %v632, %v664
        %v673 = vadd.f32 %v633, %v665
        %v674 = vadd.f32 %v634, %v666
        %v675 = vadd.f32 %v635, %v667
        %v676 = vlaneseq
        %v677 = vshrl.u32 %v676, 7
        %v678 = vsub.s32 6, %v677
        %v679 = vrot.slane %v396, %v678
        %v680 = vmul.f32 %v548, %v679
        %v681 = vmul.f32 %v549, %v679
        %v682 = vmul.f32 %v550, %v679
        %v683 = vmul.f32 %v551, %v679
        %v684 = vmul.f32 %v552, %v679
        %v685 = vmul.f32 %v553, %v679
        %v686 = vmul.f32 %v554, %v679
        %v687 = vmul.f32 %v555, %v679
        %v688 = vadd.f32 %v648, %v680
        %v689 = vadd.f32 %v649, %v681
        %v690 = vadd.f32 %v650, %v682
        %v691 = vadd.f32 %v651, %v683
        %v692 = vadd.f32 %v652, %v684
        %v693 = vadd.f32 %v653, %v685
        %v694 = vadd.f32 %v654, %v686
        %v695 = vadd.f32 %v655, %v687
        %v696 = vld [vmem:[%s403 + $0x2] sm:$0xff]
        %v697 = vld [vmem:[%s403 + $0x12] sm:$0xff]
        %v698 = vld [vmem:[%s403 + $0x22] sm:$0xff]
        %v699 = vld [vmem:[%s403 + $0x32] sm:$0xff]
        %v700 = vld [vmem:[%s403 + $0x42] sm:$0xff]
        %v701 = vld [vmem:[%s403 + $0x52] sm:$0xff]
        %v702 = vld [vmem:[%s403 + $0x62] sm:$0xff]
        %v703 = vld [vmem:[%s403 + $0x72] sm:$0xff]
        %v704 = vld [vmem:[%s403 + $0x82] sm:$0xff]
        %v705 = vld [vmem:[%s403 + $0x92] sm:$0xff]
        %v706 = vld [vmem:[%s403 + $0xa2] sm:$0xff]
        %v707 = vld [vmem:[%s403 + $0xb2] sm:$0xff]
        %v708 = vld [vmem:[%s403 + $0xc2] sm:$0xff]
        %v709 = vld [vmem:[%s403 + $0xd2] sm:$0xff]
        %v710 = vlaneseq
        %v711 = vshrl.u32 %v710, 7
        %v712 = vsub.s32 0, %v711
        %v713 = vrot.slane %v397, %v712
        %v714 = vmul.f32 %v696, %v713
        %v715 = vmul.f32 %v697, %v713
        %v716 = vmul.f32 %v698, %v713
        %v717 = vmul.f32 %v699, %v713
        %v718 = vmul.f32 %v700, %v713
        %v719 = vmul.f32 %v701, %v713
        %v720 = vmul.f32 %v702, %v713
        %v721 = vmul.f32 %v703, %v713
        %v722 = vadd.f32 %v688, %v714
        %v723 = vadd.f32 %v689, %v715
        %v724 = vadd.f32 %v690, %v716
        %v725 = vadd.f32 %v691, %v717
        %v726 = vadd.f32 %v692, %v718
        %v727 = vadd.f32 %v693, %v719
        %v728 = vadd.f32 %v694, %v720
        %v729 = vadd.f32 %v695, %v721
        %v730 = vlaneseq
        %v731 = vshrl.u32 %v730, 7
        %v732 = vsub.s32 1, %v731
        %v733 = vrot.slane %v397, %v732
        %v734 = vmul.f32 %v697, %v733
        %v735 = vmul.f32 %v698, %v733
        %v736 = vmul.f32 %v699, %v733
        %v737 = vmul.f32 %v700, %v733
        %v738 = vmul.f32 %v701, %v733
        %v739 = vmul.f32 %v702, %v733
        %v740 = vmul.f32 %v703, %v733
        %v741 = vmul.f32 %v704, %v733
        %v742 = vadd.f32 %v668, %v734
        %v743 = vadd.f32 %v669, %v735
        %v744 = vadd.f32 %v670, %v736
        %v745 = vadd.f32 %v671, %v737
        %v746 = vadd.f32 %v672, %v738
        %v747 = vadd.f32 %v673, %v739
        %v748 = vadd.f32 %v674, %v740
        %v749 = vadd.f32 %v675, %v741
        %v750 = vlaneseq
        %v751 = vshrl.u32 %v750, 7
        %v752 = vsub.s32 2, %v751
        %v753 = vrot.slane %v397, %v752
        %v754 = vmul.f32 %v698, %v753
        %v755 = vmul.f32 %v699, %v753
        %v756 = vmul.f32 %v700, %v753
        %v757 = vmul.f32 %v701, %v753
        %v758 = vmul.f32 %v702, %v753
        %v759 = vmul.f32 %v703, %v753
        %v760 = vmul.f32 %v704, %v753
        %v761 = vmul.f32 %v705, %v753
        %v762 = vadd.f32 %v722, %v754
        %v763 = vadd.f32 %v723, %v755
        %v764 = vadd.f32 %v724, %v756
        %v765 = vadd.f32 %v725, %v757
        %v766 = vadd.f32 %v726, %v758
        %v767 = vadd.f32 %v727, %v759
        %v768 = vadd.f32 %v728, %v760
        %v769 = vadd.f32 %v729, %v761
        %v770 = vlaneseq
        %v771 = vshrl.u32 %v770, 7
        %v772 = vsub.s32 3, %v771
        %v773 = vrot.slane %v397, %v772
        %v774 = vmul.f32 %v699, %v773
        %v775 = vmul.f32 %v700, %v773
        %v776 = vmul.f32 %v701, %v773
        %v777 = vmul.f32 %v702, %v773
        %v778 = vmul.f32 %v703, %v773
        %v779 = vmul.f32 %v704, %v773
        %v780 = vmul.f32 %v705, %v773
        %v781 = vmul.f32 %v706, %v773
        %v782 = vadd.f32 %v742, %v774
        %v783 = vadd.f32 %v743, %v775
        %v784 = vadd.f32 %v744, %v776
        %v785 = vadd.f32 %v745, %v777
        %v786 = vadd.f32 %v746, %v778
        %v787 = vadd.f32 %v747, %v779
        %v788 = vadd.f32 %v748, %v780
        %v789 = vadd.f32 %v749, %v781
        %v790 = vlaneseq
        %v791 = vshrl.u32 %v790, 7
        %v792 = vsub.s32 4, %v791
        %v793 = vrot.slane %v397, %v792
        %v794 = vmul.f32 %v700, %v793
        %v795 = vmul.f32 %v701, %v793
        %v796 = vmul.f32 %v702, %v793
        %v797 = vmul.f32 %v703, %v793
        %v798 = vmul.f32 %v704, %v793
        %v799 = vmul.f32 %v705, %v793
        %v800 = vmul.f32 %v706, %v793
        %v801 = vmul.f32 %v707, %v793
        %v802 = vadd.f32 %v762, %v794
        %v803 = vadd.f32 %v763, %v795
        %v804 = vadd.f32 %v764, %v796
        %v805 = vadd.f32 %v765, %v797
        %v806 = vadd.f32 %v766, %v798
        %v807 = vadd.f32 %v767, %v799
        %v808 = vadd.f32 %v768, %v800
        %v809 = vadd.f32 %v769, %v801
        %v810 = vlaneseq
        %v811 = vshrl.u32 %v810, 7
        %v812 = vsub.s32 5, %v811
        %v813 = vrot.slane %v397, %v812
        %v814 = vmul.f32 %v701, %v813
        %v815 = vmul.f32 %v702, %v813
        %v816 = vmul.f32 %v703, %v813
        %v817 = vmul.f32 %v704, %v813
        %v818 = vmul.f32 %v705, %v813
        %v819 = vmul.f32 %v706, %v813
        %v820 = vmul.f32 %v707, %v813
        %v821 = vmul.f32 %v708, %v813
        %v822 = vadd.f32 %v782, %v814
        %v823 = vadd.f32 %v783, %v815
        %v824 = vadd.f32 %v784, %v816
        %v825 = vadd.f32 %v785, %v817
        %v826 = vadd.f32 %v786, %v818
        %v827 = vadd.f32 %v787, %v819
        %v828 = vadd.f32 %v788, %v820
        %v829 = vadd.f32 %v789, %v821
        %v830 = vlaneseq
        %v831 = vshrl.u32 %v830, 7
        %v832 = vsub.s32 6, %v831
        %v833 = vrot.slane %v397, %v832
        %v834 = vmul.f32 %v702, %v833
        %v835 = vmul.f32 %v703, %v833
        %v836 = vmul.f32 %v704, %v833
        %v837 = vmul.f32 %v705, %v833
        %v838 = vmul.f32 %v706, %v833
        %v839 = vmul.f32 %v707, %v833
        %v840 = vmul.f32 %v708, %v833
        %v841 = vmul.f32 %v709, %v833
        %v842 = vadd.f32 %v802, %v834
        %v843 = vadd.f32 %v803, %v835
        %v844 = vadd.f32 %v804, %v836
        %v845 = vadd.f32 %v805, %v837
        %v846 = vadd.f32 %v806, %v838
        %v847 = vadd.f32 %v807, %v839
        %v848 = vadd.f32 %v808, %v840
        %v849 = vadd.f32 %v809, %v841
        %v850 = vld [vmem:[%s403 + $0x3] sm:$0xff]
        %v851 = vld [vmem:[%s403 + $0x13] sm:$0xff]
        %v852 = vld [vmem:[%s403 + $0x23] sm:$0xff]
        %v853 = vld [vmem:[%s403 + $0x33] sm:$0xff]
        %v854 = vld [vmem:[%s403 + $0x43] sm:$0xff]
        %v855 = vld [vmem:[%s403 + $0x53] sm:$0xff]
        %v856 = vld [vmem:[%s403 + $0x63] sm:$0xff]
        %v857 = vld [vmem:[%s403 + $0x73] sm:$0xff]
        %v858 = vld [vmem:[%s403 + $0x83] sm:$0xff]
        %v859 = vld [vmem:[%s403 + $0x93] sm:$0xff]
        %v860 = vld [vmem:[%s403 + $0xa3] sm:$0xff]
        %v861 = vld [vmem:[%s403 + $0xb3] sm:$0xff]
        %v862 = vld [vmem:[%s403 + $0xc3] sm:$0xff]
        %v863 = vld [vmem:[%s403 + $0xd3] sm:$0xff]
        %v864 = vlaneseq
        %v865 = vshrl.u32 %v864, 7
        %v866 = vsub.s32 0, %v865
        %v867 = vrot.slane %v398, %v866
        %v868 = vmul.f32 %v850, %v867
        %v869 = vmul.f32 %v851, %v867
        %v870 = vmul.f32 %v852, %v867
        %v871 = vmul.f32 %v853, %v867
        %v872 = vmul.f32 %v854, %v867
        %v873 = vmul.f32 %v855, %v867
        %v874 = vmul.f32 %v856, %v867
        %v875 = vmul.f32 %v857, %v867
        %v876 = vadd.f32 %v842, %v868
        %v877 = vadd.f32 %v843, %v869
        %v878 = vadd.f32 %v844, %v870
        %v879 = vadd.f32 %v845, %v871
        %v880 = vadd.f32 %v846, %v872
        %v881 = vadd.f32 %v847, %v873
        %v882 = vadd.f32 %v848, %v874
        %v883 = vadd.f32 %v849, %v875
        %v884 = vlaneseq
        %v885 = vshrl.u32 %v884, 7
        %v886 = vsub.s32 1, %v885
        %v887 = vrot.slane %v398, %v886
        %v888 = vmul.f32 %v851, %v887
        %v889 = vmul.f32 %v852, %v887
        %v890 = vmul.f32 %v853, %v887
        %v891 = vmul.f32 %v854, %v887
        %v892 = vmul.f32 %v855, %v887
        %v893 = vmul.f32 %v856, %v887
        %v894 = vmul.f32 %v857, %v887
        %v895 = vmul.f32 %v858, %v887
        %v896 = vadd.f32 %v822, %v888
        %v897 = vadd.f32 %v823, %v889
        %v898 = vadd.f32 %v824, %v890
        %v899 = vadd.f32 %v825, %v891
        %v900 = vadd.f32 %v826, %v892
        %v901 = vadd.f32 %v827, %v893
        %v902 = vadd.f32 %v828, %v894
        %v903 = vadd.f32 %v829, %v895
        %v904 = vlaneseq
        %v905 = vshrl.u32 %v904, 7
        %v906 = vsub.s32 2, %v905
        %v907 = vrot.slane %v398, %v906
        %v908 = vmul.f32 %v852, %v907
        %v909 = vmul.f32 %v853, %v907
        %v910 = vmul.f32 %v854, %v907
        %v911 = vmul.f32 %v855, %v907
        %v912 = vmul.f32 %v856, %v907
        %v913 = vmul.f32 %v857, %v907
        %v914 = vmul.f32 %v858, %v907
        %v915 = vmul.f32 %v859, %v907
        %v916 = vadd.f32 %v876, %v908
        %v917 = vadd.f32 %v877, %v909
        %v918 = vadd.f32 %v878, %v910
        %v919 = vadd.f32 %v879, %v911
        %v920 = vadd.f32 %v880, %v912
        %v921 = vadd.f32 %v881, %v913
        %v922 = vadd.f32 %v882, %v914
        %v923 = vadd.f32 %v883, %v915
        %v924 = vlaneseq
        %v925 = vshrl.u32 %v924, 7
        %v926 = vsub.s32 3, %v925
        %v927 = vrot.slane %v398, %v926
        %v928 = vmul.f32 %v853, %v927
        %v929 = vmul.f32 %v854, %v927
        %v930 = vmul.f32 %v855, %v927
        %v931 = vmul.f32 %v856, %v927
        %v932 = vmul.f32 %v857, %v927
        %v933 = vmul.f32 %v858, %v927
        %v934 = vmul.f32 %v859, %v927
        %v935 = vmul.f32 %v860, %v927
        %v936 = vadd.f32 %v896, %v928
        %v937 = vadd.f32 %v897, %v929
        %v938 = vadd.f32 %v898, %v930
        %v939 = vadd.f32 %v899, %v931
        %v940 = vadd.f32 %v900, %v932
        %v941 = vadd.f32 %v901, %v933
        %v942 = vadd.f32 %v902, %v934
        %v943 = vadd.f32 %v903, %v935
        %v944 = vlaneseq
        %v945 = vshrl.u32 %v944, 7
        %v946 = vsub.s32 4, %v945
        %v947 = vrot.slane %v398, %v946
        %v948 = vmul.f32 %v854, %v947
        %v949 = vmul.f32 %v855, %v947
        %v950 = vmul.f32 %v856, %v947
        %v951 = vmul.f32 %v857, %v947
        %v952 = vmul.f32 %v858, %v947
        %v953 = vmul.f32 %v859, %v947
        %v954 = vmul.f32 %v860, %v947
        %v955 = vmul.f32 %v861, %v947
        %v956 = vadd.f32 %v916, %v948
        %v957 = vadd.f32 %v917, %v949
        %v958 = vadd.f32 %v918, %v950
        %v959 = vadd.f32 %v919, %v951
        %v960 = vadd.f32 %v920, %v952
        %v961 = vadd.f32 %v921, %v953
        %v962 = vadd.f32 %v922, %v954
        %v963 = vadd.f32 %v923, %v955
        %v964 = vlaneseq
        %v965 = vshrl.u32 %v964, 7
        %v966 = vsub.s32 5, %v965
        %v967 = vrot.slane %v398, %v966
        %v968 = vmul.f32 %v855, %v967
        %v969 = vmul.f32 %v856, %v967
        %v970 = vmul.f32 %v857, %v967
        %v971 = vmul.f32 %v858, %v967
        %v972 = vmul.f32 %v859, %v967
        %v973 = vmul.f32 %v860, %v967
        %v974 = vmul.f32 %v861, %v967
        %v975 = vmul.f32 %v862, %v967
        %v976 = vadd.f32 %v936, %v968
        %v977 = vadd.f32 %v937, %v969
        %v978 = vadd.f32 %v938, %v970
        %v979 = vadd.f32 %v939, %v971
        %v980 = vadd.f32 %v940, %v972
        %v981 = vadd.f32 %v941, %v973
        %v982 = vadd.f32 %v942, %v974
        %v983 = vadd.f32 %v943, %v975
        %v984 = vlaneseq
        %v985 = vshrl.u32 %v984, 7
        %v986 = vsub.s32 6, %v985
        %v987 = vrot.slane %v398, %v986
        %v988 = vmul.f32 %v856, %v987
        %v989 = vmul.f32 %v857, %v987
        %v990 = vmul.f32 %v858, %v987
        %v991 = vmul.f32 %v859, %v987
        %v992 = vmul.f32 %v860, %v987
        %v993 = vmul.f32 %v861, %v987
        %v994 = vmul.f32 %v862, %v987
        %v995 = vmul.f32 %v863, %v987
        %v996 = vadd.f32 %v956, %v988
        %v997 = vadd.f32 %v957, %v989
        %v998 = vadd.f32 %v958, %v990
        %v999 = vadd.f32 %v959, %v991
        %v1000 = vadd.f32 %v960, %v992
        %v1001 = vadd.f32 %v961, %v993
        %v1002 = vadd.f32 %v962, %v994
        %v1003 = vadd.f32 %v963, %v995
        %v1004 = vld [vmem:[%s403 + $0x4] sm:$0xff]
        %v1005 = vld [vmem:[%s403 + $0x14] sm:$0xff]
        %v1006 = vld [vmem:[%s403 + $0x24] sm:$0xff]
        %v1007 = vld [vmem:[%s403 + $0x34] sm:$0xff]
        %v1008 = vld [vmem:[%s403 + $0x44] sm:$0xff]
        %v1009 = vld [vmem:[%s403 + $0x54] sm:$0xff]
        %v1010 = vld [vmem:[%s403 + $0x64] sm:$0xff]
        %v1011 = vld [vmem:[%s403 + $0x74] sm:$0xff]
        %v1012 = vld [vmem:[%s403 + $0x84] sm:$0xff]
        %v1013 = vld [vmem:[%s403 + $0x94] sm:$0xff]
        %v1014 = vld [vmem:[%s403 + $0xa4] sm:$0xff]
        %v1015 = vld [vmem:[%s403 + $0xb4] sm:$0xff]
        %v1016 = vld [vmem:[%s403 + $0xc4] sm:$0xff]
        %v1017 = vld [vmem:[%s403 + $0xd4] sm:$0xff]
        %v1018 = vlaneseq
        %v1019 = vshrl.u32 %v1018, 7
        %v1020 = vsub.s32 0, %v1019
        %v1021 = vrot.slane %v399, %v1020
        %v1022 = vmul.f32 %v1004, %v1021
        %v1023 = vmul.f32 %v1005, %v1021
        %v1024 = vmul.f32 %v1006, %v1021
        %v1025 = vmul.f32 %v1007, %v1021
        %v1026 = vmul.f32 %v1008, %v1021
        %v1027 = vmul.f32 %v1009, %v1021
        %v1028 = vmul.f32 %v1010, %v1021
        %v1029 = vmul.f32 %v1011, %v1021
        %v1030 = vadd.f32 %v996, %v1022
        %v1031 = vadd.f32 %v997, %v1023
        %v1032 = vadd.f32 %v998, %v1024
        %v1033 = vadd.f32 %v999, %v1025
        %v1034 = vadd.f32 %v1000, %v1026
        %v1035 = vadd.f32 %v1001, %v1027
        %v1036 = vadd.f32 %v1002, %v1028
        %v1037 = vadd.f32 %v1003, %v1029
        %v1038 = vlaneseq
        %v1039 = vshrl.u32 %v1038, 7
        %v1040 = vsub.s32 1, %v1039
        %v1041 = vrot.slane %v399, %v1040
        %v1042 = vmul.f32 %v1005, %v1041
        %v1043 = vmul.f32 %v1006, %v1041
        %v1044 = vmul.f32 %v1007, %v1041
        %v1045 = vmul.f32 %v1008, %v1041
        %v1046 = vmul.f32 %v1009, %v1041
        %v1047 = vmul.f32 %v1010, %v1041
        %v1048 = vmul.f32 %v1011, %v1041
        %v1049 = vmul.f32 %v1012, %v1041
        %v1050 = vadd.f32 %v976, %v1042
        %v1051 = vadd.f32 %v977, %v1043
        %v1052 = vadd.f32 %v978, %v1044
        %v1053 = vadd.f32 %v979, %v1045
        %v1054 = vadd.f32 %v980, %v1046
        %v1055 = vadd.f32 %v981, %v1047
        %v1056 = vadd.f32 %v982, %v1048
        %v1057 = vadd.f32 %v983, %v1049
        %v1058 = vlaneseq
        %v1059 = vshrl.u32 %v1058, 7
        %v1060 = vsub.s32 2, %v1059
        %v1061 = vrot.slane %v399, %v1060
        %v1062 = vmul.f32 %v1006, %v1061
        %v1063 = vmul.f32 %v1007, %v1061
        %v1064 = vmul.f32 %v1008, %v1061
        %v1065 = vmul.f32 %v1009, %v1061
        %v1066 = vmul.f32 %v1010, %v1061
        %v1067 = vmul.f32 %v1011, %v1061
        %v1068 = vmul.f32 %v1012, %v1061
        %v1069 = vmul.f32 %v1013, %v1061
        %v1070 = vadd.f32 %v1030, %v1062
        %v1071 = vadd.f32 %v1031, %v1063
        %v1072 = vadd.f32 %v1032, %v1064
        %v1073 = vadd.f32 %v1033, %v1065
        %v1074 = vadd.f32 %v1034, %v1066
        %v1075 = vadd.f32 %v1035, %v1067
        %v1076 = vadd.f32 %v1036, %v1068
        %v1077 = vadd.f32 %v1037, %v1069
        %v1078 = vlaneseq
        %v1079 = vshrl.u32 %v1078, 7
        %v1080 = vsub.s32 3, %v1079
        %v1081 = vrot.slane %v399, %v1080
        %v1082 = vmul.f32 %v1007, %v1081
        %v1083 = vmul.f32 %v1008, %v1081
        %v1084 = vmul.f32 %v1009, %v1081
        %v1085 = vmul.f32 %v1010, %v1081
        %v1086 = vmul.f32 %v1011, %v1081
        %v1087 = vmul.f32 %v1012, %v1081
        %v1088 = vmul.f32 %v1013, %v1081
        %v1089 = vmul.f32 %v1014, %v1081
        %v1090 = vadd.f32 %v1050, %v1082
        %v1091 = vadd.f32 %v1051, %v1083
        %v1092 = vadd.f32 %v1052, %v1084
        %v1093 = vadd.f32 %v1053, %v1085
        %v1094 = vadd.f32 %v1054, %v1086
        %v1095 = vadd.f32 %v1055, %v1087
        %v1096 = vadd.f32 %v1056, %v1088
        %v1097 = vadd.f32 %v1057, %v1089
        %v1098 = vlaneseq
        %v1099 = vshrl.u32 %v1098, 7
        %v1100 = vsub.s32 4, %v1099
        %v1101 = vrot.slane %v399, %v1100
        %v1102 = vmul.f32 %v1008, %v1101
        %v1103 = vmul.f32 %v1009, %v1101
        %v1104 = vmul.f32 %v1010, %v1101
        %v1105 = vmul.f32 %v1011, %v1101
        %v1106 = vmul.f32 %v1012, %v1101
        %v1107 = vmul.f32 %v1013, %v1101
        %v1108 = vmul.f32 %v1014, %v1101
        %v1109 = vmul.f32 %v1015, %v1101
        %v1110 = vadd.f32 %v1070, %v1102
        %v1111 = vadd.f32 %v1071, %v1103
        %v1112 = vadd.f32 %v1072, %v1104
        %v1113 = vadd.f32 %v1073, %v1105
        %v1114 = vadd.f32 %v1074, %v1106
        %v1115 = vadd.f32 %v1075, %v1107
        %v1116 = vadd.f32 %v1076, %v1108
        %v1117 = vadd.f32 %v1077, %v1109
        %v1118 = vlaneseq
        %v1119 = vshrl.u32 %v1118, 7
        %v1120 = vsub.s32 5, %v1119
        %v1121 = vrot.slane %v399, %v1120
        %v1122 = vmul.f32 %v1009, %v1121
        %v1123 = vmul.f32 %v1010, %v1121
        %v1124 = vmul.f32 %v1011, %v1121
        %v1125 = vmul.f32 %v1012, %v1121
        %v1126 = vmul.f32 %v1013, %v1121
        %v1127 = vmul.f32 %v1014, %v1121
        %v1128 = vmul.f32 %v1015, %v1121
        %v1129 = vmul.f32 %v1016, %v1121
        %v1130 = vadd.f32 %v1090, %v1122
        %v1131 = vadd.f32 %v1091, %v1123
        %v1132 = vadd.f32 %v1092, %v1124
        %v1133 = vadd.f32 %v1093, %v1125
        %v1134 = vadd.f32 %v1094, %v1126
        %v1135 = vadd.f32 %v1095, %v1127
        %v1136 = vadd.f32 %v1096, %v1128
        %v1137 = vadd.f32 %v1097, %v1129
        %v1138 = vlaneseq
        %v1139 = vshrl.u32 %v1138, 7
        %v1140 = vsub.s32 6, %v1139
        %v1141 = vrot.slane %v399, %v1140
        %v1142 = vmul.f32 %v1010, %v1141
        %v1143 = vmul.f32 %v1011, %v1141
        %v1144 = vmul.f32 %v1012, %v1141
        %v1145 = vmul.f32 %v1013, %v1141
        %v1146 = vmul.f32 %v1014, %v1141
        %v1147 = vmul.f32 %v1015, %v1141
        %v1148 = vmul.f32 %v1016, %v1141
        %v1149 = vmul.f32 %v1017, %v1141
        %v1150 = vadd.f32 %v1110, %v1142
        %v1151 = vadd.f32 %v1111, %v1143
        %v1152 = vadd.f32 %v1112, %v1144
        %v1153 = vadd.f32 %v1113, %v1145
        %v1154 = vadd.f32 %v1114, %v1146
        %v1155 = vadd.f32 %v1115, %v1147
        %v1156 = vadd.f32 %v1116, %v1148
        %v1157 = vadd.f32 %v1117, %v1149
        %v1158 = vld [vmem:[%s403 + $0x5] sm:$0xff]
        %v1159 = vld [vmem:[%s403 + $0x15] sm:$0xff]
        %v1160 = vld [vmem:[%s403 + $0x25] sm:$0xff]
        %v1161 = vld [vmem:[%s403 + $0x35] sm:$0xff]
        %v1162 = vld [vmem:[%s403 + $0x45] sm:$0xff]
        %v1163 = vld [vmem:[%s403 + $0x55] sm:$0xff]
        %v1164 = vld [vmem:[%s403 + $0x65] sm:$0xff]
        %v1165 = vld [vmem:[%s403 + $0x75] sm:$0xff]
        %v1166 = vld [vmem:[%s403 + $0x85] sm:$0xff]
        %v1167 = vld [vmem:[%s403 + $0x95] sm:$0xff]
        %v1168 = vld [vmem:[%s403 + $0xa5] sm:$0xff]
        %v1169 = vld [vmem:[%s403 + $0xb5] sm:$0xff]
        %v1170 = vld [vmem:[%s403 + $0xc5] sm:$0xff]
        %v1171 = vld [vmem:[%s403 + $0xd5] sm:$0xff]
        %v1172 = vlaneseq
        %v1173 = vshrl.u32 %v1172, 7
        %v1174 = vsub.s32 0, %v1173
        %v1175 = vrot.slane %v400, %v1174
        %v1176 = vmul.f32 %v1158, %v1175
        %v1177 = vmul.f32 %v1159, %v1175
        %v1178 = vmul.f32 %v1160, %v1175
        %v1179 = vmul.f32 %v1161, %v1175
        %v1180 = vmul.f32 %v1162, %v1175
        %v1181 = vmul.f32 %v1163, %v1175
        %v1182 = vmul.f32 %v1164, %v1175
        %v1183 = vmul.f32 %v1165, %v1175
        %v1184 = vadd.f32 %v1150, %v1176
        %v1185 = vadd.f32 %v1151, %v1177
        %v1186 = vadd.f32 %v1152, %v1178
        %v1187 = vadd.f32 %v1153, %v1179
        %v1188 = vadd.f32 %v1154, %v1180
        %v1189 = vadd.f32 %v1155, %v1181
        %v1190 = vadd.f32 %v1156, %v1182
        %v1191 = vadd.f32 %v1157, %v1183
        %v1192 = vlaneseq
        %v1193 = vshrl.u32 %v1192, 7
        %v1194 = vsub.s32 1, %v1193
        %v1195 = vrot.slane %v400, %v1194
        %v1196 = vmul.f32 %v1159, %v1195
        %v1197 = vmul.f32 %v1160, %v1195
        %v1198 = vmul.f32 %v1161, %v1195
        %v1199 = vmul.f32 %v1162, %v1195
        %v1200 = vmul.f32 %v1163, %v1195
        %v1201 = vmul.f32 %v1164, %v1195
        %v1202 = vmul.f32 %v1165, %v1195
        %v1203 = vmul.f32 %v1166, %v1195
        %v1204 = vadd.f32 %v1130, %v1196
        %v1205 = vadd.f32 %v1131, %v1197
        %v1206 = vadd.f32 %v1132, %v1198
        %v1207 = vadd.f32 %v1133, %v1199
        %v1208 = vadd.f32 %v1134, %v1200
        %v1209 = vadd.f32 %v1135, %v1201
        %v1210 = vadd.f32 %v1136, %v1202
        %v1211 = vadd.f32 %v1137, %v1203
        %v1212 = vlaneseq
        %v1213 = vshrl.u32 %v1212, 7
        %v1214 = vsub.s32 2, %v1213
        %v1215 = vrot.slane %v400, %v1214
        %v1216 = vmul.f32 %v1160, %v1215
        %v1217 = vmul.f32 %v1161, %v1215
        %v1218 = vmul.f32 %v1162, %v1215
        %v1219 = vmul.f32 %v1163, %v1215
        %v1220 = vmul.f32 %v1164, %v1215
        %v1221 = vmul.f32 %v1165, %v1215
        %v1222 = vmul.f32 %v1166, %v1215
        %v1223 = vmul.f32 %v1167, %v1215
        %v1224 = vadd.f32 %v1184, %v1216
        %v1225 = vadd.f32 %v1185, %v1217
        %v1226 = vadd.f32 %v1186, %v1218
        %v1227 = vadd.f32 %v1187, %v1219
        %v1228 = vadd.f32 %v1188, %v1220
        %v1229 = vadd.f32 %v1189, %v1221
        %v1230 = vadd.f32 %v1190, %v1222
        %v1231 = vadd.f32 %v1191, %v1223
        %v1232 = vlaneseq
        %v1233 = vshrl.u32 %v1232, 7
        %v1234 = vsub.s32 3, %v1233
        %v1235 = vrot.slane %v400, %v1234
        %v1236 = vmul.f32 %v1161, %v1235
        %v1237 = vmul.f32 %v1162, %v1235
        %v1238 = vmul.f32 %v1163, %v1235
        %v1239 = vmul.f32 %v1164, %v1235
        %v1240 = vmul.f32 %v1165, %v1235
        %v1241 = vmul.f32 %v1166, %v1235
        %v1242 = vmul.f32 %v1167, %v1235
        %v1243 = vmul.f32 %v1168, %v1235
        %v1244 = vadd.f32 %v1204, %v1236
        %v1245 = vadd.f32 %v1205, %v1237
        %v1246 = vadd.f32 %v1206, %v1238
        %v1247 = vadd.f32 %v1207, %v1239
        %v1248 = vadd.f32 %v1208, %v1240
        %v1249 = vadd.f32 %v1209, %v1241
        %v1250 = vadd.f32 %v1210, %v1242
        %v1251 = vadd.f32 %v1211, %v1243
        %v1252 = vlaneseq
        %v1253 = vshrl.u32 %v1252, 7
        %v1254 = vsub.s32 4, %v1253
        %v1255 = vrot.slane %v400, %v1254
        %v1256 = vmul.f32 %v1162, %v1255
        %v1257 = vmul.f32 %v1163, %v1255
        %v1258 = vmul.f32 %v1164, %v1255
        %v1259 = vmul.f32 %v1165, %v1255
        %v1260 = vmul.f32 %v1166, %v1255
        %v1261 = vmul.f32 %v1167, %v1255
        %v1262 = vmul.f32 %v1168, %v1255
        %v1263 = vmul.f32 %v1169, %v1255
        %v1264 = vadd.f32 %v1224, %v1256
        %v1265 = vadd.f32 %v1225, %v1257
        %v1266 = vadd.f32 %v1226, %v1258
        %v1267 = vadd.f32 %v1227, %v1259
        %v1268 = vadd.f32 %v1228, %v1260
        %v1269 = vadd.f32 %v1229, %v1261
        %v1270 = vadd.f32 %v1230, %v1262
        %v1271 = vadd.f32 %v1231, %v1263
        %v1272 = vlaneseq
        %v1273 = vshrl.u32 %v1272, 7
        %v1274 = vsub.s32 5, %v1273
        %v1275 = vrot.slane %v400, %v1274
        %v1276 = vmul.f32 %v1163, %v1275
        %v1277 = vmul.f32 %v1164, %v1275
        %v1278 = vmul.f32 %v1165, %v1275
        %v1279 = vmul.f32 %v1166, %v1275
        %v1280 = vmul.f32 %v1167, %v1275
        %v1281 = vmul.f32 %v1168, %v1275
        %v1282 = vmul.f32 %v1169, %v1275
        %v1283 = vmul.f32 %v1170, %v1275
        %v1284 = vadd.f32 %v1244, %v1276
        %v1285 = vadd.f32 %v1245, %v1277
        %v1286 = vadd.f32 %v1246, %v1278
        %v1287 = vadd.f32 %v1247, %v1279
        %v1288 = vadd.f32 %v1248, %v1280
        %v1289 = vadd.f32 %v1249, %v1281
        %v1290 = vadd.f32 %v1250, %v1282
        %v1291 = vadd.f32 %v1251, %v1283
        %v1292 = vlaneseq
        %v1293 = vshrl.u32 %v1292, 7
        %v1294 = vsub.s32 6, %v1293
        %v1295 = vrot.slane %v400, %v1294
        %v1296 = vmul.f32 %v1164, %v1295
        %v1297 = vmul.f32 %v1165, %v1295
        %v1298 = vmul.f32 %v1166, %v1295
        %v1299 = vmul.f32 %v1167, %v1295
        %v1300 = vmul.f32 %v1168, %v1295
        %v1301 = vmul.f32 %v1169, %v1295
        %v1302 = vmul.f32 %v1170, %v1295
        %v1303 = vmul.f32 %v1171, %v1295
        %v1304 = vadd.f32 %v1264, %v1296
        %v1305 = vadd.f32 %v1265, %v1297
        %v1306 = vadd.f32 %v1266, %v1298
        %v1307 = vadd.f32 %v1267, %v1299
        %v1308 = vadd.f32 %v1268, %v1300
        %v1309 = vadd.f32 %v1269, %v1301
        %v1310 = vadd.f32 %v1270, %v1302
        %v1311 = vadd.f32 %v1271, %v1303
        %v1312 = vld [vmem:[%s403 + $0x6] sm:$0xff]
        %v1313 = vld [vmem:[%s403 + $0x16] sm:$0xff]
        %v1314 = vld [vmem:[%s403 + $0x26] sm:$0xff]
        %v1315 = vld [vmem:[%s403 + $0x36] sm:$0xff]
        %v1316 = vld [vmem:[%s403 + $0x46] sm:$0xff]
        %v1317 = vld [vmem:[%s403 + $0x56] sm:$0xff]
        %v1318 = vld [vmem:[%s403 + $0x66] sm:$0xff]
        %v1319 = vld [vmem:[%s403 + $0x76] sm:$0xff]
        %v1320 = vld [vmem:[%s403 + $0x86] sm:$0xff]
        %v1321 = vld [vmem:[%s403 + $0x96] sm:$0xff]
        %v1322 = vld [vmem:[%s403 + $0xa6] sm:$0xff]
        %v1323 = vld [vmem:[%s403 + $0xb6] sm:$0xff]
        %v1324 = vld [vmem:[%s403 + $0xc6] sm:$0xff]
        %v1325 = vld [vmem:[%s403 + $0xd6] sm:$0xff]
        %v1326 = vlaneseq
        %v1327 = vshrl.u32 %v1326, 7
        %v1328 = vsub.s32 0, %v1327
        %v1329 = vrot.slane %v401, %v1328
        %v1330 = vmul.f32 %v1312, %v1329
        %v1331 = vmul.f32 %v1313, %v1329
        %v1332 = vmul.f32 %v1314, %v1329
        %v1333 = vmul.f32 %v1315, %v1329
        %v1334 = vmul.f32 %v1316, %v1329
        %v1335 = vmul.f32 %v1317, %v1329
        %v1336 = vmul.f32 %v1318, %v1329
        %v1337 = vmul.f32 %v1319, %v1329
        %v1338 = vadd.f32 %v1304, %v1330
        %v1339 = vadd.f32 %v1305, %v1331
        %v1340 = vadd.f32 %v1306, %v1332
        %v1341 = vadd.f32 %v1307, %v1333
        %v1342 = vadd.f32 %v1308, %v1334
        %v1343 = vadd.f32 %v1309, %v1335
        %v1344 = vadd.f32 %v1310, %v1336
        %v1345 = vadd.f32 %v1311, %v1337
        %v1346 = vlaneseq
        %v1347 = vshrl.u32 %v1346, 7
        %v1348 = vsub.s32 1, %v1347
        %v1349 = vrot.slane %v401, %v1348
        %v1350 = vmul.f32 %v1313, %v1349
        %v1351 = vmul.f32 %v1314, %v1349
        %v1352 = vmul.f32 %v1315, %v1349
        %v1353 = vmul.f32 %v1316, %v1349
        %v1354 = vmul.f32 %v1317, %v1349
        %v1355 = vmul.f32 %v1318, %v1349
        %v1356 = vmul.f32 %v1319, %v1349
        %v1357 = vmul.f32 %v1320, %v1349
        %v1358 = vadd.f32 %v1284, %v1350
        %v1359 = vadd.f32 %v1285, %v1351
        %v1360 = vadd.f32 %v1286, %v1352
        %v1361 = vadd.f32 %v1287, %v1353
        %v1362 = vadd.f32 %v1288, %v1354
        %v1363 = vadd.f32 %v1289, %v1355
        %v1364 = vadd.f32 %v1290, %v1356
        %v1365 = vadd.f32 %v1291, %v1357
        %v1366 = vlaneseq
        %v1367 = vshrl.u32 %v1366, 7
        %v1368 = vsub.s32 2, %v1367
        %v1369 = vrot.slane %v401, %v1368
        %v1370 = vmul.f32 %v1314, %v1369
        %v1371 = vmul.f32 %v1315, %v1369
        %v1372 = vmul.f32 %v1316, %v1369
        %v1373 = vmul.f32 %v1317, %v1369
        %v1374 = vmul.f32 %v1318, %v1369
        %v1375 = vmul.f32 %v1319, %v1369
        %v1376 = vmul.f32 %v1320, %v1369
        %v1377 = vmul.f32 %v1321, %v1369
        %v1378 = vadd.f32 %v1338, %v1370
        %v1379 = vadd.f32 %v1339, %v1371
        %v1380 = vadd.f32 %v1340, %v1372
        %v1381 = vadd.f32 %v1341, %v1373
        %v1382 = vadd.f32 %v1342, %v1374
        %v1383 = vadd.f32 %v1343, %v1375
        %v1384 = vadd.f32 %v1344, %v1376
        %v1385 = vadd.f32 %v1345, %v1377
        %v1386 = vlaneseq
        %v1387 = vshrl.u32 %v1386, 7
        %v1388 = vsub.s32 3, %v1387
        %v1389 = vrot.slane %v401, %v1388
        %v1390 = vmul.f32 %v1315, %v1389
        %v1391 = vmul.f32 %v1316, %v1389
        %v1392 = vmul.f32 %v1317, %v1389
        %v1393 = vmul.f32 %v1318, %v1389
        %v1394 = vmul.f32 %v1319, %v1389
        %v1395 = vmul.f32 %v1320, %v1389
        %v1396 = vmul.f32 %v1321, %v1389
        %v1397 = vmul.f32 %v1322, %v1389
        %v1398 = vadd.f32 %v1358, %v1390
        %v1399 = vadd.f32 %v1359, %v1391
        %v1400 = vadd.f32 %v1360, %v1392
        %v1401 = vadd.f32 %v1361, %v1393
        %v1402 = vadd.f32 %v1362, %v1394
        %v1403 = vadd.f32 %v1363, %v1395
        %v1404 = vadd.f32 %v1364, %v1396
        %v1405 = vadd.f32 %v1365, %v1397
        %v1406 = vlaneseq
        %v1407 = vshrl.u32 %v1406, 7
        %v1408 = vsub.s32 4, %v1407
        %v1409 = vrot.slane %v401, %v1408
        %v1410 = vmul.f32 %v1316, %v1409
        %v1411 = vmul.f32 %v1317, %v1409
        %v1412 = vmul.f32 %v1318, %v1409
        %v1413 = vmul.f32 %v1319, %v1409
        %v1414 = vmul.f32 %v1320, %v1409
        %v1415 = vmul.f32 %v1321, %v1409
        %v1416 = vmul.f32 %v1322, %v1409
        %v1417 = vmul.f32 %v1323, %v1409
        %v1418 = vadd.f32 %v1378, %v1410
        %v1419 = vadd.f32 %v1379, %v1411
        %v1420 = vadd.f32 %v1380, %v1412
        %v1421 = vadd.f32 %v1381, %v1413
        %v1422 = vadd.f32 %v1382, %v1414
        %v1423 = vadd.f32 %v1383, %v1415
        %v1424 = vadd.f32 %v1384, %v1416
        %v1425 = vadd.f32 %v1385, %v1417
        %v1426 = vlaneseq
        %v1427 = vshrl.u32 %v1426, 7
        %v1428 = vsub.s32 5, %v1427
        %v1429 = vrot.slane %v401, %v1428
        %v1430 = vmul.f32 %v1317, %v1429
        %v1431 = vmul.f32 %v1318, %v1429
        %v1432 = vmul.f32 %v1319, %v1429
        %v1433 = vmul.f32 %v1320, %v1429
        %v1434 = vmul.f32 %v1321, %v1429
        %v1435 = vmul.f32 %v1322, %v1429
        %v1436 = vmul.f32 %v1323, %v1429
        %v1437 = vmul.f32 %v1324, %v1429
        %v1438 = vadd.f32 %v1398, %v1430
        %v1439 = vadd.f32 %v1399, %v1431
        %v1440 = vadd.f32 %v1400, %v1432
        %v1441 = vadd.f32 %v1401, %v1433
        %v1442 = vadd.f32 %v1402, %v1434
        %v1443 = vadd.f32 %v1403, %v1435
        %v1444 = vadd.f32 %v1404, %v1436
        %v1445 = vadd.f32 %v1405, %v1437
        %v1446 = vlaneseq
        %v1447 = vshrl.u32 %v1446, 7
        %v1448 = vsub.s32 6, %v1447
        %v1449 = vrot.slane %v401, %v1448
        %v1450 = vmul.f32 %v1318, %v1449
        %v1451 = vmul.f32 %v1319, %v1449
        %v1452 = vmul.f32 %v1320, %v1449
        %v1453 = vmul.f32 %v1321, %v1449
        %v1454 = vmul.f32 %v1322, %v1449
        %v1455 = vmul.f32 %v1323, %v1449
        %v1456 = vmul.f32 %v1324, %v1449
        %v1457 = vmul.f32 %v1325, %v1449
        %v1458 = vadd.f32 %v1418, %v1450
        %v1459 = vadd.f32 %v1419, %v1451
        %v1460 = vadd.f32 %v1420, %v1452
        %v1461 = vadd.f32 %v1421, %v1453
        %v1462 = vadd.f32 %v1422, %v1454
        %v1463 = vadd.f32 %v1423, %v1455
        %v1464 = vadd.f32 %v1424, %v1456
        %v1465 = vadd.f32 %v1425, %v1457
        %v1466 = vadd.f32 %v1458, %v1438
        %v1467 = vadd.f32 %v1459, %v1439
        %v1468 = vadd.f32 %v1460, %v1440
        %v1469 = vadd.f32 %v1461, %v1441
        %v1470 = vadd.f32 %v1462, %v1442
        %v1471 = vadd.f32 %v1463, %v1443
        %v1472 = vadd.f32 %v1464, %v1444
        %v1473 = vadd.f32 %v1465, %v1445
        %v1474 = vld [vmem:[#allocation7] sm:$0x1]
        %v1476 = vlaneseq
        %v1477 = vshrl.u32 %v1476, 7
        %v1478 = vsub.s32 0, %v1477
        %v1479 = vrot.slane %v1474, %v1478
        %v1481 = vadd.f32 %v1466, %v1479
        %v1482 = vadd.f32 %v1467, %v1479
        %v1483 = vadd.f32 %v1468, %v1479
        %v1484 = vadd.f32 %v1469, %v1479
        %v1485 = vadd.f32 %v1470, %v1479
        %v1486 = vadd.f32 %v1471, %v1479
        %v1487 = vadd.f32 %v1472, %v1479
        %v1488 = vadd.f32 %v1473, %v1479
        %vm1489 = vcmask 130048
        %v1490 = vsel %vm1489, %v1481, 0.0
        %1491 = vadd.xlane.f32.xlu0 %v1490
        %v1492 = vpop.xlane.xlu0 %1491
        %v1493 = vsel %vm1489, %v1482, 0.0
        %1494 = vadd.xlane.f32.xlu0 %v1493
        %v1495 = vpop.xlane.xlu0 %1494
        %v1496 = vsel %vm1489, %v1483, 0.0
        %1497 = vadd.xlane.f32.xlu0 %v1496
        %v1498 = vpop.xlane.xlu0 %1497
        %v1499 = vsel %vm1489, %v1484, 0.0
        %1500 = vadd.xlane.f32.xlu0 %v1499
        %v1501 = vpop.xlane.xlu0 %1500
        %v1502 = vsel %vm1489, %v1485, 0.0
        %1503 = vadd.xlane.f32.xlu0 %v1502
        %v1504 = vpop.xlane.xlu0 %1503
        %v1505 = vsel %vm1489, %v1486, 0.0
        %1506 = vadd.xlane.f32.xlu0 %v1505
        %v1507 = vpop.xlane.xlu0 %1506
        %v1508 = vsel %vm1489, %v1487, 0.0
        %1509 = vadd.xlane.f32.xlu0 %v1508
        %v1510 = vpop.xlane.xlu0 %1509
        %v1511 = vsel %vm1489, %v1488, 0.0
        %1512 = vadd.xlane.f32.xlu0 %v1511
        %v1513 = vpop.xlane.xlu0 %1512
        %v1514 = vrcp.pop 16.0
        %v1515 = vmul.f32 %v1492, %v1514
        %v1516 = vmul.f32 %v1495, %v1514
        %v1517 = vmul.f32 %v1498, %v1514
        %v1518 = vmul.f32 %v1501, %v1514
        %v1519 = vmul.f32 %v1504, %v1514
        %v1520 = vmul.f32 %v1507, %v1514
        %v1521 = vmul.f32 %v1510, %v1514
        %v1522 = vmul.f32 %v1513, %v1514
        %v1523 = vsub.f32 %v1481, %v1515
        %v1524 = vsub.f32 %v1482, %v1516
        %v1525 = vsub.f32 %v1483, %v1517
        %v1526 = vsub.f32 %v1484, %v1518
        %v1527 = vsub.f32 %v1485, %v1519
        %v1528 = vsub.f32 %v1486, %v1520
        %v1529 = vsub.f32 %v1487, %v1521
        %v1530 = vsub.f32 %v1488, %v1522
        %v1531 = vmul.f32 %v1523, %v1523
        %v1532 = vmul.f32 %v1524, %v1524
        %v1533 = vmul.f32 %v1525, %v1525
        %v1534 = vmul.f32 %v1526, %v1526
        %v1535 = vmul.f32 %v1527, %v1527
        %v1536 = vmul.f32 %v1528, %v1528
        %v1537 = vmul.f32 %v1529, %v1529
        %v1538 = vmul.f32 %v1530, %v1530
        %v1539 = vsel %vm1489, %v1531, 0.0
        %1540 = vadd.xlane.f32.xlu0 %v1539
        %v1541 = vpop.xlane.xlu0 %1540
        %v1542 = vsel %vm1489, %v1532, 0.0
        %1543 = vadd.xlane.f32.xlu0 %v1542
        %v1544 = vpop.xlane.xlu0 %1543
        %v1545 = vsel %vm1489, %v1533, 0.0
        %1546 = vadd.xlane.f32.xlu0 %v1545
        %v1547 = vpop.xlane.xlu0 %1546
        %v1548 = vsel %vm1489, %v1534, 0.0
        %1549 = vadd.xlane.f32.xlu0 %v1548
        %v1550 = vpop.xlane.xlu0 %1549
        %v1551 = vsel %vm1489, %v1535, 0.0
        %1552 = vadd.xlane.f32.xlu0 %v1551
        %v1553 = vpop.xlane.xlu0 %1552
        %v1554 = vsel %vm1489, %v1536, 0.0
        %1555 = vadd.xlane.f32.xlu0 %v1554
        %v1556 = vpop.xlane.xlu0 %1555
        %v1557 = vsel %vm1489, %v1537, 0.0
        %1558 = vadd.xlane.f32.xlu0 %v1557
        %v1559 = vpop.xlane.xlu0 %1558
        %v1560 = vsel %vm1489, %v1538, 0.0
        %1561 = vadd.xlane.f32.xlu0 %v1560
        %v1562 = vpop.xlane.xlu0 %1561
        %v1563 = vmul.f32 %v1541, %v1514
        %v1564 = vmul.f32 %v1544, %v1514
        %v1565 = vmul.f32 %v1547, %v1514
        %v1566 = vmul.f32 %v1550, %v1514
        %v1567 = vmul.f32 %v1553, %v1514
        %v1568 = vmul.f32 %v1556, %v1514
        %v1569 = vmul.f32 %v1559, %v1514
        %v1570 = vmul.f32 %v1562, %v1514
        %v1571 = vadd.f32 %v1563, 1e-06
        %v1572 = vadd.f32 %v1564, 1e-06
        %v1573 = vadd.f32 %v1565, 1e-06
        %v1574 = vadd.f32 %v1566, 1e-06
        %v1575 = vadd.f32 %v1567, 1e-06
        %v1576 = vadd.f32 %v1568, 1e-06
        %v1577 = vadd.f32 %v1569, 1e-06
        %v1578 = vadd.f32 %v1570, 1e-06
        %v1579 = vrsqrt.pop %v1571
        %v1580 = vrsqrt.pop %v1572
        %v1581 = vrsqrt.pop %v1573
        %v1582 = vrsqrt.pop %v1574
        %v1583 = vrsqrt.pop %v1575
        %v1584 = vrsqrt.pop %v1576
        %v1585 = vrsqrt.pop %v1577
        %v1586 = vrsqrt.pop %v1578
        %v1587 = vmul.f32 %v1523, %v1579
        %v1588 = vmul.f32 %v1524, %v1580
        %v1589 = vmul.f32 %v1525, %v1581
        %v1590 = vmul.f32 %v1526, %v1582
        %v1591 = vmul.f32 %v1527, %v1583
        %v1592 = vmul.f32 %v1528, %v1584
        %v1593 = vmul.f32 %v1529, %v1585
        %v1594 = vmul.f32 %v1530, %v1586
        %v1595 = vpack.c.bf16 %v1588, %v1587
        %v1596 = vpack.c.bf16 %v1590, %v1589
        %v1597 = vpack.c.bf16 %v1592, %v1591
        %v1598 = vpack.c.bf16 %v1594, %v1593
        %v1599 = vld [vmem:[#allocation8] sm:$0xf]
        %v1600 = vld [vmem:[#allocation8 + $0x4] sm:$0xf]
        %v1601 = vld [vmem:[#allocation10] sm:$0x1]
        %v1603 = vlaneseq
        %v1604 = vshrl.u32 %v1603, 7
        %v1605 = vsub.s32 0, %v1604
        %v1606 = vrot.slane %v1601, %v1605
        %v1610 = vunpack.c.l.b16 %v1599
        %v1611 = vunpack.c.l.b16 %v1600
        %v1612 = vpack.c.b16 %v1611, %v1610
        %v1615 = vsel %vm1489, %v1595, 0
        %v1618 = vsel %vm1489, %v1596, 0
        %v1621 = vsel %vm1489, %v1597, 0
        %v1624 = vsel %vm1489, %v1598, 0
        %1626 = vmatprep.subr.bf16.mxu0 0
        %1627 = vmatpush1.bf16.msra.mxu0 %v1612
        %1628 = vmatprep.subr.bf16.mxu0 0
        %1629 = vmatpush1.bf16.msra.mxu0 0
        %1630 = vmatprep.subr.bf16.mxu0 0
        %1631 = vmatpush1.bf16.msra.mxu0 0
        %1632 = vmatprep.subr.bf16.mxu0 0
        %1633 = vmatpush1.bf16.msra.mxu0 0
        %1634 = vmatprep.subr.bf16.mxu0 0
        %1635 = vmatpush1.bf16.msra.mxu0 0
        %1636 = vmatprep.subr.bf16.mxu0 0
        %1637 = vmatpush1.bf16.msra.mxu0 0
        %1638 = vmatprep.subr.bf16.mxu0 0
        %1639 = vmatpush1.bf16.msra.mxu0 0
        %1640 = vmatprep.subr.bf16.mxu0 0
        %1641 = vmatpush1.bf16.msra.mxu0 0
        %1642 = vmatprep.subr.bf16.mxu0 0
        %1643 = vmatpush1.bf16.msra.mxu0 0
        %1644 = vmatprep.subr.bf16.mxu0 0
        %1645 = vmatpush1.bf16.msra.mxu0 0
        %1646 = vmatprep.subr.bf16.mxu0 0
        %1647 = vmatpush1.bf16.msra.mxu0 0
        %1648 = vmatprep.subr.bf16.mxu0 0
        %1649 = vmatpush1.bf16.msra.mxu0 0
        %1650 = vmatprep.subr.bf16.mxu0 0
        %1651 = vmatpush1.bf16.msra.mxu0 0
        %1652 = vmatprep.subr.bf16.mxu0 0
        %1653 = vmatpush1.bf16.msra.mxu0 0
        %1654 = vmatprep.subr.bf16.mxu0 0
        %1655 = vmatpush1.bf16.msra.mxu0 0
        %1656 = vmatprep.subr.bf16.mxu0 0
        %1657 = vmatpush1.bf16.msra.mxu0 0
        %1658 = vmatprep.mubr.bf16.mxu0 0
        %1659 = vmatmul.mubr.bf16.gmra.mrb[0].mxu0 %v1615
        %v1660 = vpop.f32.mrb[0].mxu0
        %v1661 = vadd.f32 %v1606, %v1660
        %v1662 = vpop.f32.mrb[0].mxu0
        %v1663 = vpop.f32.mrb[0].mxu0
        %v1664 = vadd.f32 %v1606, %v1663
        %v1665 = vpop.f32.mrb[0].mxu0
        %1666 = vmatprep.mubr.bf16.mxu0 0
        %1667 = vmatmul.mubr.bf16.gmra.mrb[0].mxu0 %v1618
        %v1668 = vpop.f32.mrb[0].mxu0
        %v1669 = vadd.f32 %v1606, %v1668
        %v1670 = vpop.f32.mrb[0].mxu0
        %v1671 = vpop.f32.mrb[0].mxu0
        %v1672 = vadd.f32 %v1606, %v1671
        %v1673 = vpop.f32.mrb[0].mxu0
        %1674 = vmatprep.mubr.bf16.mxu0 0
        %1675 = vmatmul.mubr.bf16.gmra.mrb[0].mxu0 %v1621
        %v1676 = vpop.f32.mrb[0].mxu0
        %v1677 = vadd.f32 %v1606, %v1676
        %v1678 = vpop.f32.mrb[0].mxu0
        %v1679 = vpop.f32.mrb[0].mxu0
        %v1680 = vadd.f32 %v1606, %v1679
        %v1681 = vpop.f32.mrb[0].mxu0
        %1682 = vmatprep.mubr.bf16.mxu0 0
        %1683 = vmatmul.mubr.bf16.gmra.mrb[0].mxu0 %v1624
        %v1684 = vpop.f32.mrb[0].mxu0
        %v1685 = vadd.f32 %v1606, %v1684
        %v1686 = vpop.f32.mrb[0].mxu0
        %v1687 = vpop.f32.mrb[0].mxu0
        %v1688 = vadd.f32 %v1606, %v1687
        %v1689 = vpop.f32.mrb[0].mxu0
        %1690 = vdwg.mxu0
        %v1691 = vmul.f32 %v1661, 0.5
        %v1692 = vmul.f32 %v1664, 0.5
        %v1693 = vmul.f32 %v1669, 0.5
        %v1694 = vmul.f32 %v1672, 0.5
        %v1695 = vmul.f32 %v1677, 0.5
        %v1696 = vmul.f32 %v1680, 0.5
        %v1697 = vmul.f32 %v1685, 0.5
        %v1698 = vmul.f32 %v1688, 0.5
        %v1699 = vmul.f32 %v1661, 0.70710677
        %v1700 = vmul.f32 %v1664, 0.70710677
        %v1701 = vmul.f32 %v1669, 0.70710677
        %v1702 = vmul.f32 %v1672, 0.70710677
        %v1703 = vmul.f32 %v1677, 0.70710677
        %v1704 = vmul.f32 %v1680, 0.70710677
        %v1705 = vmul.f32 %v1685, 0.70710677
        %v1706 = vmul.f32 %v1688, 0.70710677
        %v1707 = verf.f32.pop %v1699
        %v1708 = verf.f32.pop %v1700
        %v1709 = verf.f32.pop %v1701
        %v1710 = verf.f32.pop %v1702
        %v1711 = verf.f32.pop %v1703
        %v1712 = verf.f32.pop %v1704
        %v1713 = verf.f32.pop %v1705
        %v1714 = verf.f32.pop %v1706
        %v1715 = vadd.f32 %v1707, 1.0
        %v1716 = vadd.f32 %v1708, 1.0
        %v1717 = vadd.f32 %v1709, 1.0
        %v1718 = vadd.f32 %v1710, 1.0
        %v1719 = vadd.f32 %v1711, 1.0
        %v1720 = vadd.f32 %v1712, 1.0
        %v1721 = vadd.f32 %v1713, 1.0
        %v1722 = vadd.f32 %v1714, 1.0
        %v1723 = vmul.f32 %v1691, %v1715
        %v1724 = vmul.f32 %v1692, %v1716
        %v1725 = vmul.f32 %v1693, %v1717
        %v1726 = vmul.f32 %v1694, %v1718
        %v1727 = vmul.f32 %v1695, %v1719
        %v1728 = vmul.f32 %v1696, %v1720
        %v1729 = vmul.f32 %v1697, %v1721
        %v1730 = vmul.f32 %v1698, %v1722
        %v1731 = vpack.c.bf16 %v1724, %v1723
        %v1732 = vpack.c.bf16 %v1726, %v1725
        %v1733 = vpack.c.bf16 %v1728, %v1727
        %v1734 = vpack.c.bf16 %v1730, %v1729
        %v1735 = vld [vmem:[#allocation11] sm:$0xf]
        %v1736 = vld [vmem:[#allocation11 + $0x4] sm:$0xf]
        %v1737 = vld [vmem:[#allocation11 + $0x8] sm:$0xf]
        %v1738 = vld [vmem:[#allocation11 + $0xc] sm:$0xf]
        %v1739 = vld [vmem:[#allocation11 + $0x10] sm:$0xf]
        %v1740 = vld [vmem:[#allocation11 + $0x14] sm:$0xf]
        %v1741 = vld [vmem:[#allocation11 + $0x18] sm:$0xf]
        %v1742 = vld [vmem:[#allocation11 + $0x1c] sm:$0xf]
        %v1743 = vld [vmem:[#allocation13] sm:$0x1]
        %v1745 = vlaneseq
        %v1746 = vshrl.u32 %v1745, 7
        %v1747 = vsub.s32 0, %v1746
        %v1748 = vrot.slane %v1743, %v1747
        %v1758 = vunpack.c.l.b16 %v1735
        %v1759 = vunpack.c.l.b16 %v1736
        %v1760 = vunpack.c.l.b16 %v1737
        %v1761 = vunpack.c.l.b16 %v1738
        %v1762 = vunpack.c.l.b16 %v1739
        %v1763 = vunpack.c.l.b16 %v1740
        %v1764 = vunpack.c.l.b16 %v1741
        %v1765 = vunpack.c.l.b16 %v1742
        %v1766 = vpack.c.b16 %v1759, %v1758
        %v1767 = vpack.c.b16 %v1761, %v1760
        %v1768 = vpack.c.b16 %v1763, %v1762
        %v1769 = vpack.c.b16 %v1765, %v1764
        %vm1774 = vcmask 523264
        %v1776 = vsel %vm1774, %v1731, 0
        %v1779 = vsel %vm1774, %v1732, 0
        %v1782 = vsel %vm1774, %v1733, 0
        %v1785 = vsel %vm1774, %v1734, 0
        %1787 = vmatprep.subr.bf16.mxu0 0
        %1788 = vmatpush1.bf16.msra.mxu0 %v1766
        %1789 = vmatprep.subr.bf16.mxu0 0
        %1790 = vmatpush1.bf16.msra.mxu0 %v1767
        %1791 = vmatprep.subr.bf16.mxu0 0
        %1792 = vmatpush1.bf16.msra.mxu0 %v1768
        %1793 = vmatprep.subr.bf16.mxu0 0
        %1794 = vmatpush1.bf16.msra.mxu0 %v1769
        %1795 = vmatprep.subr.bf16.mxu0 0
        %1796 = vmatpush1.bf16.msra.mxu0 0
        %1797 = vmatprep.subr.bf16.mxu0 0
        %1798 = vmatpush1.bf16.msra.mxu0 0
        %1799 = vmatprep.subr.bf16.mxu0 0
        %1800 = vmatpush1.bf16.msra.mxu0 0
        %1801 = vmatprep.subr.bf16.mxu0 0
        %1802 = vmatpush1.bf16.msra.mxu0 0
        %1803 = vmatprep.subr.bf16.mxu0 0
        %1804 = vmatpush1.bf16.msra.mxu0 0
        %1805 = vmatprep.subr.bf16.mxu0 0
        %1806 = vmatpush1.bf16.msra.mxu0 0
        %1807 = vmatprep.subr.bf16.mxu0 0
        %1808 = vmatpush1.bf16.msra.mxu0 0
        %1809 = vmatprep.subr.bf16.mxu0 0
        %1810 = vmatpush1.bf16.msra.mxu0 0
        %1811 = vmatprep.subr.bf16.mxu0 0
        %1812 = vmatpush1.bf16.msra.mxu0 0
        %1813 = vmatprep.subr.bf16.mxu0 0
        %1814 = vmatpush1.bf16.msra.mxu0 0
        %1815 = vmatprep.subr.bf16.mxu0 0
        %1816 = vmatpush1.bf16.msra.mxu0 0
        %1817 = vmatprep.subr.bf16.mxu0 0
        %1818 = vmatpush1.bf16.msra.mxu0 0
        %1819 = vmatprep.mubr.bf16.mxu0 0
        %1820 = vmatmul.mubr.bf16.gmra.mrb[0].mxu0 %v1776
        %v1821 = vpop.f32.mrb[0].mxu0
        %v1822 = vadd.f32 %v1748, %v1821
        %v1823 = vpop.f32.mrb[0].mxu0
        %v1824 = vpop.f32.mrb[0].mxu0
        %v1825 = vadd.f32 %v1748, %v1824
        %v1826 = vpop.f32.mrb[0].mxu0
        %1827 = vmatprep.mubr.bf16.mxu0 0
        %1828 = vmatmul.mubr.bf16.gmra.mrb[0].mxu0 %v1779
        %v1829 = vpop.f32.mrb[0].mxu0
        %v1830 = vadd.f32 %v1748, %v1829
        %v1831 = vpop.f32.mrb[0].mxu0
        %v1832 = vpop.f32.mrb[0].mxu0
        %v1833 = vadd.f32 %v1748, %v1832
        %v1834 = vpop.f32.mrb[0].mxu0
        %1835 = vmatprep.mubr.bf16.mxu0 0
        %1836 = vmatmul.mubr.bf16.gmra.mrb[0].mxu0 %v1782
        %v1837 = vpop.f32.mrb[0].mxu0
        %v1838 = vadd.f32 %v1748, %v1837
        %v1839 = vpop.f32.mrb[0].mxu0
        %v1840 = vpop.f32.mrb[0].mxu0
        %v1841 = vadd.f32 %v1748, %v1840
        %v1842 = vpop.f32.mrb[0].mxu0
        %1843 = vmatprep.mubr.bf16.mxu0 0
        %1844 = vmatmul.mubr.bf16.gmra.mrb[0].mxu0 %v1785
        %v1845 = vpop.f32.mrb[0].mxu0
        %v1846 = vadd.f32 %v1748, %v1845
        %v1847 = vpop.f32.mrb[0].mxu0
        %v1848 = vpop.f32.mrb[0].mxu0
        %v1849 = vadd.f32 %v1748, %v1848
        %v1850 = vpop.f32.mrb[0].mxu0
        %1851 = vdwg.mxu0
        %s1852 = sadd.s32 %s394, 3
        %s1853 = smul.u32 %s1852, 16
        %s1854 = scalar_lea.vmem %s337, %s1853 [#allocation2]
        %v1855 = vld [vmem:[%s1854 + $0x3] sm:$0xff]
        %v1856 = vld [vmem:[%s1854 + $0x13] sm:$0xff]
        %v1857 = vld [vmem:[%s1854 + $0x23] sm:$0xff]
        %v1858 = vld [vmem:[%s1854 + $0x33] sm:$0xff]
        %v1859 = vld [vmem:[%s1854 + $0x43] sm:$0xff]
        %v1860 = vld [vmem:[%s1854 + $0x53] sm:$0xff]
        %v1861 = vld [vmem:[%s1854 + $0x63] sm:$0xff]
        %v1862 = vld [vmem:[%s1854 + $0x73] sm:$0xff]
        %v1863 = vadd.f32 %v1855, %v1822
        %v1864 = vadd.f32 %v1856, %v1825
        %v1865 = vadd.f32 %v1857, %v1830
        %v1866 = vadd.f32 %v1858, %v1833
        %v1867 = vadd.f32 %v1859, %v1838
        %v1868 = vadd.f32 %v1860, %v1841
        %v1869 = vadd.f32 %v1861, %v1846
        %v1870 = vadd.f32 %v1862, %v1849
        %1871 = vst.msk [vmem:[%s391] sm:$0xff] %vm1489, %v1863
        %1872 = vst.msk [vmem:[%s391 + $0x8] sm:$0xff] %vm1489, %v1864
        %1873 = vst.msk [vmem:[%s391 + $0x10] sm:$0xff] %vm1489, %v1865
        %1874 = vst.msk [vmem:[%s391 + $0x18] sm:$0xff] %vm1489, %v1866
        %1875 = vst.msk [vmem:[%s391 + $0x20] sm:$0xff] %vm1489, %v1867
        %1876 = vst.msk [vmem:[%s391 + $0x28] sm:$0xff] %vm1489, %v1868
        %1877 = vst.msk [vmem:[%s391 + $0x30] sm:$0xff] %vm1489, %v1869
        %1878 = vst.msk [vmem:[%s391 + $0x38] sm:$0xff] %vm1489, %v1870
        %s1879 = sand.u32 %s201, 1
        %s1880 = scalar_lea.sflag [#allocation4], %s1879
        %s1881 = sand.u32 %s201, 1
        %s1882 = smul.addr %s1881, 64
        %s1883 = scalar_lea.vmem [#allocation14], %s1882
        // Predicated region
        $region77: #{tpu_custom_call.1} parent=47 // pred_check
          %p1884 = pneg %p211
        $region78: #{tpu_custom_call.1} parent=47 // pred_check_branch
          %1886 = sbr.rel (%p1884) target = $region80
        $region79: #{tpu_custom_call.1} parent=47 // pred_region
          %s1887 = smul.u32 8, %s32
          %s1889 = ssub.s32 1024, 1024
          %1890 = vsyncadd %s1880, %s1889
          %s1891 = smul.addr %s31, 8
          %s1892 = sadd.s32 %s1887, %s1891
          %s1893 = smul.addr %s1892, 128
          %s1894 = scalar_lea.hbm %s7, %s1893
          %s1895 = sshll.u32 %s1883, 4
          %s1896 = int_to_ptr.vmem [resolvable:$true] %s1895
          %1901 = dma.vmem_to_hbm [thread:$0]  %s1896, 1024, %s1894, %s1880, 128, 128, 8
        $region80: #{tpu_custom_call.1} parent=47 // pred_fallthru
          _
      $region48: #{tpu_custom_call.1} parent=5 // pred_fallthru
        _
      %p1902 = scmp.le.s32.totalorder 2, %s22
      // Predicated region
      $region81: #{tpu_custom_call.1} parent=5 // pred_check
        %p1903 = pneg %p1902
      $region82: #{tpu_custom_call.1} parent=5 // pred_check_branch
        %1905 = sbr.rel (%p1903) target = $region84
      $region83: #{tpu_custom_call.1} parent=5 // pred_region
        %s1906 = ssub.s32 %s22, 2
        // Predicated region
        $region85: #{tpu_custom_call.1} parent=83 // pred_check
          %p1907 = pneg %p217
        $region86: #{tpu_custom_call.1} parent=83 // pred_check_branch
          %1909 = sbr.rel (%p1907) target = $region88
        $region87: #{tpu_custom_call.1} parent=83 // pred_region
          %s1910 = sand.u32 %s202, 1
          %s1911 = scalar_lea.sflag [#allocation4], %s1910
          %s1912 = sand.u32 %s202, 1
          %s1913 = smul.addr %s1912, 64
          %s1914 = scalar_lea.vmem [#allocation14], %s1913
          %1915 = dma.done %s1911, 1024
        $region88: #{tpu_custom_call.1} parent=83 // pred_fallthru
          _
      $region84: #{tpu_custom_call.1} parent=5 // pred_fallthru
        _
    $region6: #{tpu_custom_call.1} parent=1 // loop_footer
      %s26 = sadd.s32 1, %s22
    $region7: #{tpu_custom_call.1} parent=1 // loop_footer_branch
      %21 = sbr.rel target = $region3
    $region8: #{tpu_custom_call.1} parent=1 // loop_exit
      _
    %1916 = vsyncpa [#allocation3], 1
    %s1917 = scalar_lea.sflag [#allocation3], 1
    %1918 = vsyncpa %s1917, 1
    %1919 = vsyncpa [#allocation6], 1
    %1920 = vsyncpa [#allocation9], 1
    %1921 = vsyncpa [#allocation12], 1
    %1922 = vsyncpa [#allocation4], 1
    %s1923 = scalar_lea.sflag [#allocation4], 1
    %1924 = vsyncpa %s1923, 1

</llo_original>
